<compile_context>
chip_gen: v6e
topology: v6e:2x2x1
jax: 0.10.0
libtpu: 0.0.40
codegen_flags: <defaults>
</compile_context>

<pallas_src>
import functools

import jax
import jax.numpy as jnp
from jax.experimental import pallas as pl
from jax.experimental.pallas import tpu as pltpu


# ----------------------------- in-kernel math helpers -----------------------------

def _erf(x):
    # Abramowitz & Stegun 7.1.26 (max abs error ~1.5e-7); uses only exp, which
    # lowers cleanly in Mosaic (EUP).  Matches torch.erf to ~f32 precision.
    p = 0.3275911
    a1, a2, a3, a4, a5 = (0.254829592, -0.284496736, 1.421413741,
                          -1.453152027, 1.061405429)
    s = jnp.where(x >= 0.0, 1.0, -1.0)
    ax = jnp.abs(x)
    t = 1.0 / (1.0 + p * ax)
    poly = ((((a5 * t + a4) * t + a3) * t + a2) * t + a1) * t
    return s * (1.0 - poly * jnp.exp(-ax * ax))


def _gelu_exact(x):
    # nn.GELU() default = exact (erf-based) GELU.
    return 0.5 * x * (1.0 + _erf(x * 0.7071067811865476))


def _layernorm(x, g, b, eps=1e-5):
    mu = jnp.mean(x, axis=-1, keepdims=True)
    var = jnp.mean(jnp.square(x - mu), axis=-1, keepdims=True)
    return (x - mu) * jax.lax.rsqrt(var + eps) * g + b


# --------------------------------- Pallas kernel ----------------------------------

def fused_transformer_kernel(x_ref, ln1_g_ref, ln1_b_ref, w_qkv_ref, w_out_ref,
                             b_out_ref, ln2_g_ref, ln2_b_ref, w1_ref, b1_ref,
                             w2_ref, b2_ref, o_ref, cat_ref,
                             *, heads, dim_head, compute_dtype):
    d = pl.program_id(1)

    # Layer 0: seed the resident activation (held in the output block, which stays
    # in VMEM across the whole "arbitrary" depth axis) from the input block.
    @pl.when(d == 0)
    def _():
        o_ref[...] = x_ref[...]

    bb, N, D = o_ref.shape
    inner = heads * dim_head
    R = bb * N

    def mm(a, b):
        # Matmul in compute_dtype (bf16 on v6e/v7x if requested), f32 accumulate.
        return jnp.dot(a.astype(compute_dtype), b.astype(compute_dtype),
                       preferred_element_type=jnp.float32)

    def bmm(spec, a, b):
        return jnp.einsum(spec, a.astype(compute_dtype), b.astype(compute_dtype),
                          preferred_element_type=jnp.float32)

    x = o_ref[...].reshape(R, D).astype(jnp.float32)

    # --- PreNorm + multi-head self-attention + residual ---
    xn = _layernorm(x, ln1_g_ref[0], ln1_b_ref[0])
    qkv = mm(xn, w_qkv_ref[0])                     # (R, 3*inner); Q columns pre-scaled

    for h in range(heads):                         # static head loop: extraction only
        lo = h * dim_head
        hi = lo + dim_head
        qh = qkv[:, lo:hi].reshape(bb, N, dim_head)
        kh = qkv[:, inner + lo:inner + hi].reshape(bb, N, dim_head)
        vh = qkv[:, 2 * inner + lo:2 * inner + hi].reshape(bb, N, dim_head)

        # scale already folded into W_qkv's Q columns at parameter-stacking time.
        dots = bmm('bnd,bmd->bnm', qh, kh)         # (bb, N, N)
        dots = dots - jnp.max(dots, axis=-1, keepdims=True)
        e = jnp.exp(dots)
        attn = e * pl.reciprocal(jnp.sum(e, axis=-1, keepdims=True), approx=True)
        oh = bmm('bnm,bmd->bnd', attn, vh)         # (bb, N, dim_head)
        cat_ref[:, lo:hi] = oh.reshape(R, dim_head)

    # Single output projection (R, inner) @ (inner, D); bias added once.
    attn_out = mm(cat_ref[...], w_out_ref[0]) + b_out_ref[0]
    x1 = x + attn_out

    # --- PreNorm + FeedForward (Linear -> GELU -> Linear) + residual ---
    x1n = _layernorm(x1, ln2_g_ref[0], ln2_b_ref[0])
    hid = _gelu_exact(mm(x1n, w1_ref[0]) + b1_ref[0])
    ffn = mm(hid, w2_ref[0]) + b2_ref[0]

    o_ref[...] = (x1 + ffn).reshape(bb, N, D).astype(o_ref.dtype)
    # TODO(synk): dropout (p=0.0) and the per-layer attention weights ('weights'/'vis')
    # are not part of Transformer.forward's return value, so they are dropped.


# ---------------------------------- JAX wrappers -----------------------------------

def _stack_layer_params(layers, *, heads, dim_head):
    """Stack per-layer params along a leading depth axis; fold 1/sqrt(dh) into Q."""
    inner = heads * dim_head
    scale = dim_head ** (-0.5)
    stacked = {k: jnp.stack([p[k] for p in layers], axis=0) for k in layers[0]}
    stacked["w_qkv"] = stacked["w_qkv"].at[:, :, :inner].multiply(scale)
    return stacked


def transformer_forward(x, layers, *, heads, dim_head,
                        num_batch_blocks=None, compute_dtype=jnp.float32,
                        vmem_limit_bytes=32 * 1024 * 1024):
    B, N, D = x.shape
    depth = len(layers)
    inner = heads * dim_head
    mlp_dim = layers[0]["w1"].shape[1]

    if num_batch_blocks is None:
        # Default 1: weights are indexed by depth only, so each extra batch block
        # re-streams the full weight stack from HBM.  On single-TC chips (v5e/v6e)
        # that is pure overhead in the (common) weight-streaming-bound regime.
        # On v7x (2 TCs/chip) pass num_batch_blocks=2 when rows are large enough
        # to be compute-bound; the batch axis is marked "parallel" for megacore.
        num_batch_blocks = 1
    assert B % num_batch_blocks == 0
    bb = B // num_batch_blocks

    p = _stack_layer_params(layers, heads=heads, dim_head=dim_head)

    kernel = functools.partial(fused_transformer_kernel, heads=heads,
                               dim_head=dim_head, compute_dtype=compute_dtype)

    def depth_spec(*dims):
        n = len(dims)
        return pl.BlockSpec((1,) + tuple(dims), lambda b, d, n=n: (d,) + (0,) * n)

    x_spec = pl.BlockSpec((bb, N, D), lambda b, d: (b, 0, 0))

    in_specs = [
        x_spec,                                            # x
        depth_spec(1, D), depth_spec(1, D),                # ln1 gamma / beta
        depth_spec(D, 3 * inner),                          # W_qkv (Q cols pre-scaled)
        depth_spec(inner, D), depth_spec(1, D),            # W_out, b_out
        depth_spec(1, D), depth_spec(1, D),                # ln2 gamma / beta
        depth_spec(D, mlp_dim), depth_spec(1, mlp_dim),    # W1, b1
        depth_spec(mlp_dim, D), depth_spec(1, D),          # W2, b2
    ]

    return pl.pallas_call(
        kernel,
        out_shape=jax.ShapeDtypeStruct((B, N, D), x.dtype),
        grid=(num_batch_blocks, depth),                    # depth = sequential carry
        in_specs=in_specs,
        out_specs=x_spec,                                  # resident across depth
        scratch_shapes=[pltpu.VMEM((bb * N, inner), jnp.float32)],
        compiler_params=pltpu.CompilerParams(
            dimension_semantics=("parallel", "arbitrary"),
            vmem_limit_bytes=vmem_limit_bytes),
    )(x, p["ln1_g"], p["ln1_b"], p["w_qkv"], p["w_out"], p["b_out"],
      p["ln2_g"], p["ln2_b"], p["w1"], p["b1"], p["w2"], p["b2"])


def init_transformer_params(key, dim, depth, heads, dim_head, mlp_dim):
    inner = heads * dim_head
    layers = []
    for _ in range(depth):
        key, k0, k1, k2, k3, k4 = jax.random.split(key, 6)

        def nrm(k, shape, fan_in):
            return jax.random.normal(k, shape, jnp.float32) / jnp.sqrt(
                jnp.float32(fan_in))

        layers.append(dict(
            ln1_g=jnp.ones((1, dim), jnp.float32),
            ln1_b=jnp.zeros((1, dim), jnp.float32),
            w_qkv=nrm(k0, (dim, 3 * inner), dim),
            w_out=nrm(k1, (inner, dim), inner),
            b_out=0.01 * jax.random.normal(k2, (1, dim), jnp.float32),
            ln2_g=jnp.ones((1, dim), jnp.float32),
            ln2_b=jnp.zeros((1, dim), jnp.float32),
            w1=nrm(k3, (dim, mlp_dim), dim),
            b1=jnp.zeros((1, mlp_dim), jnp.float32),
            w2=nrm(k4, (mlp_dim, dim), mlp_dim),
            b2=jnp.zeros((1, dim), jnp.float32),
        ))
    return layers


# ------------------------------- pure-JAX reference --------------------------------

def _ref_layernorm(x, g, b, eps=1e-5):
    mu = jnp.mean(x, axis=-1, keepdims=True)
    var = jnp.mean(jnp.square(x - mu), axis=-1, keepdims=True)
    return (x - mu) / jnp.sqrt(var + eps) * g[0] + b[0]


def reference_forward(x, layers, *, heads, dim_head):
    inner = heads * dim_head
    scale = dim_head ** (-0.5)
    B, N, D = x.shape
    for p in layers:
        xn = _ref_layernorm(x, p["ln1_g"], p["ln1_b"])
        qkv = xn @ p["w_qkv"]
        q, k, v = jnp.split(qkv, 3, axis=-1)

        def to_heads(t):
            return t.reshape(B, N, heads, dim_head).transpose(0, 2, 1, 3)

        q, k, v = map(to_heads, (q, k, v))
        dots = jnp.einsum("bhnd,bhmd->bhnm", q, k) * scale
        attn = jax.nn.softmax(dots, axis=-1)
        out = jnp.einsum("bhnm,bhmd->bhnd", attn, v)
        out = out.transpose(0, 2, 1, 3).reshape(B, N, inner)
        x = out @ p["w_out"] + p["b_out"][0] + x

        xn2 = _ref_layernorm(x, p["ln2_g"], p["ln2_b"])
        hid = jax.nn.gelu(xn2 @ p["w1"] + p["b1"][0], approximate=False)
        x = hid @ p["w2"] + p["b2"][0] + x
    return x


# --------------------------------------- main ---------------------------------------

if __name__ == "__main__":
    # Small shapes consistent with the module's forward: x is (batch, seq, dim).
    B, N, D = 2, 8, 32
    DEPTH, HEADS, DIM_HEAD, MLP_DIM = 2, 4, 8, 64

    key = jax.random.PRNGKey(0)
    key, kx, kp = jax.random.split(key, 3)
    x = jax.random.normal(kx, (B, N, D), jnp.float32)
    layers = init_transformer_params(kp, D, DEPTH, HEADS, DIM_HEAD, MLP_DIM)

    # compute_dtype=jnp.bfloat16 is recommended on v6e/v7x at production sizes;
    # f32 here for exact parity with the f32 reference at tiny test shapes.
    out = transformer_forward(x, layers, heads=HEADS, dim_head=DIM_HEAD,
                              compute_dtype=jnp.float32)
    out = jax.block_until_ready(out)

    ref = jax.block_until_ready(
        reference_forward(x, layers, heads=HEADS, dim_head=DIM_HEAD))

    assert out.shape == (B, N, D)
    assert bool(jnp.allclose(out, ref, atol=1e-2, rtol=1e-2))
    print("KERNEL_OK")
</pallas_src>

<mosaic_0001>
module attributes {stable_mosaic.version = 11 : i64} {
  func.func @fused_transformer_kernel(%arg0: i32, %arg1: i32, %arg2: memref<2x8x32xf32, #tpu.memory_space<vmem>>, %arg3: memref<1x1x32xf32, #tpu.memory_space<vmem>>, %arg4: memref<1x1x32xf32, #tpu.memory_space<vmem>>, %arg5: memref<1x32x96xf32, #tpu.memory_space<vmem>>, %arg6: memref<1x32x32xf32, #tpu.memory_space<vmem>>, %arg7: memref<1x1x32xf32, #tpu.memory_space<vmem>>, %arg8: memref<1x1x32xf32, #tpu.memory_space<vmem>>, %arg9: memref<1x1x32xf32, #tpu.memory_space<vmem>>, %arg10: memref<1x32x64xf32, #tpu.memory_space<vmem>>, %arg11: memref<1x1x64xf32, #tpu.memory_space<vmem>>, %arg12: memref<1x64x32xf32, #tpu.memory_space<vmem>>, %arg13: memref<1x1x32xf32, #tpu.memory_space<vmem>>, %arg14: memref<2x8x32xf32, #tpu.memory_space<vmem>>, %arg15: memref<16x32xf32, #tpu.memory_space<vmem>>) attributes {dimension_semantics = [#tpu.dimension_semantics<parallel>, #tpu.dimension_semantics<arbitrary>], iteration_bounds = array<i64: 1, 2>, scalar_prefetch = 0 : i64, scratch_operands = 1 : i64, tpu.core_type = #tpu.core_type<tc>, window_params = [{transform_indices = @transform_0, window_bounds = array<i64: 2, 8, 32>}, {transform_indices = @transform_1, window_bounds = array<i64: 1, 1, 32>}, {transform_indices = @transform_2, window_bounds = array<i64: 1, 1, 32>}, {transform_indices = @transform_3, window_bounds = array<i64: 1, 32, 96>}, {transform_indices = @transform_4, window_bounds = array<i64: 1, 32, 32>}, {transform_indices = @transform_5, window_bounds = array<i64: 1, 1, 32>}, {transform_indices = @transform_6, window_bounds = array<i64: 1, 1, 32>}, {transform_indices = @transform_7, window_bounds = array<i64: 1, 1, 32>}, {transform_indices = @transform_8, window_bounds = array<i64: 1, 32, 64>}, {transform_indices = @transform_9, window_bounds = array<i64: 1, 1, 64>}, {transform_indices = @transform_10, window_bounds = array<i64: 1, 64, 32>}, {transform_indices = @transform_11, window_bounds = array<i64: 1, 1, 32>}, {transform_indices = @transform_12, window_bounds = array<i64: 2, 8, 32>}]} {
    %c0_i32 = arith.constant 0 : i32
    %0 = arith.cmpi eq, %arg1, %c0_i32 : i32
    %1 = arith.extui %0 : i1 to i32
    %c0_i32_0 = arith.constant 0 : i32
    %2 = arith.cmpi ne, %1, %c0_i32_0 : i32
    scf.if %2 {
      %c0_91 = arith.constant 0 : index
      %c0_92 = arith.constant 0 : index
      %c0_93 = arith.constant 0 : index
      %207 = vector.load %arg2[%c0_91, %c0_92, %c0_93] : memref<2x8x32xf32, #tpu.memory_space<vmem>>, vector<2x8x32xf32>
      %c0_94 = arith.constant 0 : index
      %c0_95 = arith.constant 0 : index
      %c0_96 = arith.constant 0 : index
      %208 = vector.load %arg14[%c0_94, %c0_95, %c0_96] : memref<2x8x32xf32, #tpu.memory_space<vmem>>, vector<2x8x32xf32>
      tpu.vector_store %arg14[%c0_94, %c0_95, %c0_96], %207 {strides = array<i32>} : memref<2x8x32xf32, #tpu.memory_space<vmem>>, vector<2x8x32xf32>,
    } else {
    }
    %c0 = arith.constant 0 : index
    %c0_1 = arith.constant 0 : index
    %c0_2 = arith.constant 0 : index
    %3 = vector.load %arg14[%c0, %c0_1, %c0_2] : memref<2x8x32xf32, #tpu.memory_space<vmem>>, vector<2x8x32xf32>
    %4 = vector.shape_cast %3 : vector<2x8x32xf32> to vector<16x32xf32>
    %c0_3 = arith.constant 0 : index
    %c0_4 = arith.constant 0 : index
    %c0_5 = arith.constant 0 : index
    %5 = vector.load %arg3[%c0_3, %c0_4, %c0_5] : memref<1x1x32xf32, #tpu.memory_space<vmem>>, vector<1x1x32xf32>
    %6 = vector.shape_cast %5 : vector<1x1x32xf32> to vector<1x32xf32>
    %c0_6 = arith.constant 0 : index
    %c0_7 = arith.constant 0 : index
    %c0_8 = arith.constant 0 : index
    %7 = vector.load %arg4[%c0_6, %c0_7, %c0_8] : memref<1x1x32xf32, #tpu.memory_space<vmem>>, vector<1x1x32xf32>
    %8 = vector.shape_cast %7 : vector<1x1x32xf32> to vector<1x32xf32>
    %cst = arith.constant dense<0.000000e+00> : vector<16xf32>
    %9 = vector.multi_reduction <add>, %4, %cst [1] : vector<16x32xf32> to vector<16xf32>
    %10 = vector.shape_cast %9 : vector<16xf32> to vector<16x1xf32>
    %cst_9 = arith.constant 3.200000e+01 : f32
    %11 = vector.broadcast %cst_9 : f32 to vector<16x1xf32>
    %12 = arith.divf %10, %11 : vector<16x1xf32>
    %13 = vector.broadcast %12 : vector<16x1xf32> to vector<16x32xf32>
    %14 = arith.subf %4, %13 : vector<16x32xf32>
    %15 = arith.mulf %14, %14 : vector<16x32xf32>
    %cst_10 = arith.constant dense<0.000000e+00> : vector<16xf32>
    %16 = vector.multi_reduction <add>, %15, %cst_10 [1] : vector<16x32xf32> to vector<16xf32>
    %17 = vector.shape_cast %16 : vector<16xf32> to vector<16x1xf32>
    %cst_11 = arith.constant 3.200000e+01 : f32
    %18 = vector.broadcast %cst_11 : f32 to vector<16x1xf32>
    %19 = arith.divf %17, %18 : vector<16x1xf32>
    %20 = vector.broadcast %12 : vector<16x1xf32> to vector<16x32xf32>
    %21 = arith.subf %4, %20 : vector<16x32xf32>
    %cst_12 = arith.constant 9.99999974E-6 : f32
    %22 = vector.broadcast %cst_12 : f32 to vector<16x1xf32>
    %23 = arith.addf %19, %22 : vector<16x1xf32>
    %24 = math.rsqrt %23 : vector<16x1xf32>
    %25 = vector.broadcast %24 : vector<16x1xf32> to vector<16x32xf32>
    %26 = arith.mulf %21, %25 : vector<16x32xf32>
    %27 = vector.broadcast %6 : vector<1x32xf32> to vector<16x32xf32>
    %28 = arith.mulf %26, %27 : vector<16x32xf32>
    %29 = vector.broadcast %8 : vector<1x32xf32> to vector<16x32xf32>
    %30 = arith.addf %28, %29 : vector<16x32xf32>
    %c0_13 = arith.constant 0 : index
    %c0_14 = arith.constant 0 : index
    %c0_15 = arith.constant 0 : index
    %31 = vector.load %arg5[%c0_13, %c0_14, %c0_15] : memref<1x32x96xf32, #tpu.memory_space<vmem>>, vector<1x32x96xf32>
    %32 = vector.shape_cast %31 : vector<1x32x96xf32> to vector<32x96xf32>
    %cst_16 = arith.constant dense<0.000000e+00> : vector<16x96xf32>
    %33 = tpu.matmul %30, %32, %cst_16 {dimension_numbers = #tpu.dot_dimension_numbers<[1], [0], [0], [1], [0, 0, 1, 1], [], []>} : vector<16x32xf32>, vector<32x96xf32>, vector<16x96xf32> -> vector<16x96xf32>
    %34 = vector.extract_strided_slice %33 {offsets = [0, 0], sizes = [16, 8], strides = [1, 1]} : vector<16x96xf32> to vector<16x8xf32>
    %35 = vector.shape_cast %34 : vector<16x8xf32> to vector<2x8x8xf32>
    %36 = vector.extract_strided_slice %33 {offsets = [0, 32], sizes = [16, 8], strides = [1, 1]} : vector<16x96xf32> to vector<16x8xf32>
    %37 = vector.shape_cast %36 : vector<16x8xf32> to vector<2x8x8xf32>
    %38 = vector.extract_strided_slice %33 {offsets = [0, 64], sizes = [16, 8], strides = [1, 1]} : vector<16x96xf32> to vector<16x8xf32>
    %39 = vector.shape_cast %38 : vector<16x8xf32> to vector<2x8x8xf32>
    "tpu.trace_start"() <{level = 10 : i32, message = "bnd,bmd->bnm"}> : () -> ()
    %cst_17 = arith.constant dense<0.000000e+00> : vector<2x8x8xf32>
    %40 = tpu.matmul %35, %37, %cst_17 {dimension_numbers = #tpu.dot_dimension_numbers<[2], [2], [1], [1], [0, 0, 0, 1, 1, 1], [0], [0]>} : vector<2x8x8xf32>, vector<2x8x8xf32>, vector<2x8x8xf32> -> vector<2x8x8xf32>
    "tpu.trace_stop"() : () -> ()
    %cst_18 = arith.constant dense<0xFF800000> : vector<2x8xf32>
    %41 = vector.multi_reduction <maximumf>, %40, %cst_18 [2] : vector<2x8x8xf32> to vector<2x8xf32>
    %42 = vector.shape_cast %41 : vector<2x8xf32> to vector<2x8x1xf32>
    %43 = vector.broadcast %42 : vector<2x8x1xf32> to vector<2x8x8xf32>
    %44 = arith.subf %40, %43 : vector<2x8x8xf32>
    %45 = math.exp %44 : vector<2x8x8xf32>
    %cst_19 = arith.constant dense<0.000000e+00> : vector<2x8xf32>
    %46 = vector.multi_reduction <add>, %45, %cst_19 [2] : vector<2x8x8xf32> to vector<2x8xf32>
    %47 = vector.shape_cast %46 : vector<2x8xf32> to vector<2x8x1xf32>
    %48 = tpu.reciprocal %47 {approx = true} : vector<2x8x1xf32> -> vector<2x8x1xf32>
    %49 = vector.broadcast %48 : vector<2x8x1xf32> to vector<2x8x8xf32>
    %50 = arith.mulf %45, %49 : vector<2x8x8xf32>
    "tpu.trace_start"() <{level = 10 : i32, message = "bnm,bmd->bnd"}> : () -> ()
    %cst_20 = arith.constant dense<0.000000e+00> : vector<2x8x8xf32>
    %51 = tpu.matmul %50, %39, %cst_20 {dimension_numbers = #tpu.dot_dimension_numbers<[2], [1], [1], [2], [0, 0, 0, 1, 1, 2], [0], [0]>} : vector<2x8x8xf32>, vector<2x8x8xf32>, vector<2x8x8xf32> -> vector<2x8x8xf32>
    "tpu.trace_stop"() : () -> ()
    %52 = vector.shape_cast %51 : vector<2x8x8xf32> to vector<16x8xf32>
    %c0_21 = arith.constant 0 : index
    %c0_22 = arith.constant 0 : index
    %53 = vector.load %arg15[%c0_21, %c0_22] : memref<16x32xf32, #tpu.memory_space<vmem>>, vector<16x8xf32>
    tpu.vector_store %arg15[%c0_21, %c0_22], %52 {strides = array<i32>} : memref<16x32xf32, #tpu.memory_space<vmem>>, vector<16x8xf32>,
    %54 = vector.extract_strided_slice %33 {offsets = [0, 8], sizes = [16, 8], strides = [1, 1]} : vector<16x96xf32> to vector<16x8xf32>
    %55 = vector.shape_cast %54 : vector<16x8xf32> to vector<2x8x8xf32>
    %56 = vector.extract_strided_slice %33 {offsets = [0, 40], sizes = [16, 8], strides = [1, 1]} : vector<16x96xf32> to vector<16x8xf32>
    %57 = vector.shape_cast %56 : vector<16x8xf32> to vector<2x8x8xf32>
    %58 = vector.extract_strided_slice %33 {offsets = [0, 72], sizes = [16, 8], strides = [1, 1]} : vector<16x96xf32> to vector<16x8xf32>
    %59 = vector.shape_cast %58 : vector<16x8xf32> to vector<2x8x8xf32>
    "tpu.trace_start"() <{level = 10 : i32, message = "bnd,bmd->bnm"}> : () -> ()
    %cst_23 = arith.constant dense<0.000000e+00> : vector<2x8x8xf32>
    %60 = tpu.matmul %55, %57, %cst_23 {dimension_numbers = #tpu.dot_dimension_numbers<[2], [2], [1], [1], [0, 0, 0, 1, 1, 1], [0], [0]>} : vector<2x8x8xf32>, vector<2x8x8xf32>, vector<2x8x8xf32> -> vector<2x8x8xf32>
    "tpu.trace_stop"() : () -> ()
    %cst_24 = arith.constant dense<0xFF800000> : vector<2x8xf32>
    %61 = vector.multi_reduction <maximumf>, %60, %cst_24 [2] : vector<2x8x8xf32> to vector<2x8xf32>
    %62 = vector.shape_cast %61 : vector<2x8xf32> to vector<2x8x1xf32>
    %63 = vector.broadcast %62 : vector<2x8x1xf32> to vector<2x8x8xf32>
    %64 = arith.subf %60, %63 : vector<2x8x8xf32>
    %65 = math.exp %64 : vector<2x8x8xf32>
    %cst_25 = arith.constant dense<0.000000e+00> : vector<2x8xf32>
    %66 = vector.multi_reduction <add>, %65, %cst_25 [2] : vector<2x8x8xf32> to vector<2x8xf32>
    %67 = vector.shape_cast %66 : vector<2x8xf32> to vector<2x8x1xf32>
    %68 = tpu.reciprocal %67 {approx = true} : vector<2x8x1xf32> -> vector<2x8x1xf32>
    %69 = vector.broadcast %68 : vector<2x8x1xf32> to vector<2x8x8xf32>
    %70 = arith.mulf %65, %69 : vector<2x8x8xf32>
    "tpu.trace_start"() <{level = 10 : i32, message = "bnm,bmd->bnd"}> : () -> ()
    %cst_26 = arith.constant dense<0.000000e+00> : vector<2x8x8xf32>
    %71 = tpu.matmul %70, %59, %cst_26 {dimension_numbers = #tpu.dot_dimension_numbers<[2], [1], [1], [2], [0, 0, 0, 1, 1, 2], [0], [0]>} : vector<2x8x8xf32>, vector<2x8x8xf32>, vector<2x8x8xf32> -> vector<2x8x8xf32>
    "tpu.trace_stop"() : () -> ()
    %72 = vector.shape_cast %71 : vector<2x8x8xf32> to vector<16x8xf32>
    %c0_27 = arith.constant 0 : index
    %c8 = arith.constant 8 : index
    %73 = vector.load %arg15[%c0_27, %c8] : memref<16x32xf32, #tpu.memory_space<vmem>>, vector<16x8xf32>
    tpu.vector_store %arg15[%c0_27, %c8], %72 {strides = array<i32>} : memref<16x32xf32, #tpu.memory_space<vmem>>, vector<16x8xf32>,
    %74 = vector.extract_strided_slice %33 {offsets = [0, 16], sizes = [16, 8], strides = [1, 1]} : vector<16x96xf32> to vector<16x8xf32>
    %75 = vector.shape_cast %74 : vector<16x8xf32> to vector<2x8x8xf32>
    %76 = vector.extract_strided_slice %33 {offsets = [0, 48], sizes = [16, 8], strides = [1, 1]} : vector<16x96xf32> to vector<16x8xf32>
    %77 = vector.shape_cast %76 : vector<16x8xf32> to vector<2x8x8xf32>
    %78 = vector.extract_strided_slice %33 {offsets = [0, 80], sizes = [16, 8], strides = [1, 1]} : vector<16x96xf32> to vector<16x8xf32>
    %79 = vector.shape_cast %78 : vector<16x8xf32> to vector<2x8x8xf32>
    "tpu.trace_start"() <{level = 10 : i32, message = "bnd,bmd->bnm"}> : () -> ()
    %cst_28 = arith.constant dense<0.000000e+00> : vector<2x8x8xf32>
    %80 = tpu.matmul %75, %77, %cst_28 {dimension_numbers = #tpu.dot_dimension_numbers<[2], [2], [1], [1], [0, 0, 0, 1, 1, 1], [0], [0]>} : vector<2x8x8xf32>, vector<2x8x8xf32>, vector<2x8x8xf32> -> vector<2x8x8xf32>
    "tpu.trace_stop"() : () -> ()
    %cst_29 = arith.constant dense<0xFF800000> : vector<2x8xf32>
    %81 = vector.multi_reduction <maximumf>, %80, %cst_29 [2] : vector<2x8x8xf32> to vector<2x8xf32>
    %82 = vector.shape_cast %81 : vector<2x8xf32> to vector<2x8x1xf32>
    %83 = vector.broadcast %82 : vector<2x8x1xf32> to vector<2x8x8xf32>
    %84 = arith.subf %80, %83 : vector<2x8x8xf32>
    %85 = math.exp %84 : vector<2x8x8xf32>
    %cst_30 = arith.constant dense<0.000000e+00> : vector<2x8xf32>
    %86 = vector.multi_reduction <add>, %85, %cst_30 [2] : vector<2x8x8xf32> to vector<2x8xf32>
    %87 = vector.shape_cast %86 : vector<2x8xf32> to vector<2x8x1xf32>
    %88 = tpu.reciprocal %87 {approx = true} : vector<2x8x1xf32> -> vector<2x8x1xf32>
    %89 = vector.broadcast %88 : vector<2x8x1xf32> to vector<2x8x8xf32>
    %90 = arith.mulf %85, %89 : vector<2x8x8xf32>
    "tpu.trace_start"() <{level = 10 : i32, message = "bnm,bmd->bnd"}> : () -> ()
    %cst_31 = arith.constant dense<0.000000e+00> : vector<2x8x8xf32>
    %91 = tpu.matmul %90, %79, %cst_31 {dimension_numbers = #tpu.dot_dimension_numbers<[2], [1], [1], [2], [0, 0, 0, 1, 1, 2], [0], [0]>} : vector<2x8x8xf32>, vector<2x8x8xf32>, vector<2x8x8xf32> -> vector<2x8x8xf32>
    "tpu.trace_stop"() : () -> ()
    %92 = vector.shape_cast %91 : vector<2x8x8xf32> to vector<16x8xf32>
    %c0_32 = arith.constant 0 : index
    %c16 = arith.constant 16 : index
    %93 = vector.load %arg15[%c0_32, %c16] : memref<16x32xf32, #tpu.memory_space<vmem>>, vector<16x8xf32>
    tpu.vector_store %arg15[%c0_32, %c16], %92 {strides = array<i32>} : memref<16x32xf32, #tpu.memory_space<vmem>>, vector<16x8xf32>,
    %94 = vector.extract_strided_slice %33 {offsets = [0, 24], sizes = [16, 8], strides = [1, 1]} : vector<16x96xf32> to vector<16x8xf32>
    %95 = vector.shape_cast %94 : vector<16x8xf32> to vector<2x8x8xf32>
    %96 = vector.extract_strided_slice %33 {offsets = [0, 56], sizes = [16, 8], strides = [1, 1]} : vector<16x96xf32> to vector<16x8xf32>
    %97 = vector.shape_cast %96 : vector<16x8xf32> to vector<2x8x8xf32>
    %98 = vector.extract_strided_slice %33 {offsets = [0, 88], sizes = [16, 8], strides = [1, 1]} : vector<16x96xf32> to vector<16x8xf32>
    %99 = vector.shape_cast %98 : vector<16x8xf32> to vector<2x8x8xf32>
    "tpu.trace_start"() <{level = 10 : i32, message = "bnd,bmd->bnm"}> : () -> ()
    %cst_33 = arith.constant dense<0.000000e+00> : vector<2x8x8xf32>
    %100 = tpu.matmul %95, %97, %cst_33 {dimension_numbers = #tpu.dot_dimension_numbers<[2], [2], [1], [1], [0, 0, 0, 1, 1, 1], [0], [0]>} : vector<2x8x8xf32>, vector<2x8x8xf32>, vector<2x8x8xf32> -> vector<2x8x8xf32>
    "tpu.trace_stop"() : () -> ()
    %cst_34 = arith.constant dense<0xFF800000> : vector<2x8xf32>
    %101 = vector.multi_reduction <maximumf>, %100, %cst_34 [2] : vector<2x8x8xf32> to vector<2x8xf32>
    %102 = vector.shape_cast %101 : vector<2x8xf32> to vector<2x8x1xf32>
    %103 = vector.broadcast %102 : vector<2x8x1xf32> to vector<2x8x8xf32>
    %104 = arith.subf %100, %103 : vector<2x8x8xf32>
    %105 = math.exp %104 : vector<2x8x8xf32>
    %cst_35 = arith.constant dense<0.000000e+00> : vector<2x8xf32>
    %106 = vector.multi_reduction <add>, %105, %cst_35 [2] : vector<2x8x8xf32> to vector<2x8xf32>
    %107 = vector.shape_cast %106 : vector<2x8xf32> to vector<2x8x1xf32>
    %108 = tpu.reciprocal %107 {approx = true} : vector<2x8x1xf32> -> vector<2x8x1xf32>
    %109 = vector.broadcast %108 : vector<2x8x1xf32> to vector<2x8x8xf32>
    %110 = arith.mulf %105, %109 : vector<2x8x8xf32>
    "tpu.trace_start"() <{level = 10 : i32, message = "bnm,bmd->bnd"}> : () -> ()
    %cst_36 = arith.constant dense<0.000000e+00> : vector<2x8x8xf32>
    %111 = tpu.matmul %110, %99, %cst_36 {dimension_numbers = #tpu.dot_dimension_numbers<[2], [1], [1], [2], [0, 0, 0, 1, 1, 2], [0], [0]>} : vector<2x8x8xf32>, vector<2x8x8xf32>, vector<2x8x8xf32> -> vector<2x8x8xf32>
    "tpu.trace_stop"() : () -> ()
    %112 = vector.shape_cast %111 : vector<2x8x8xf32> to vector<16x8xf32>
    %c0_37 = arith.constant 0 : index
    %c24 = arith.constant 24 : index
    %113 = vector.load %arg15[%c0_37, %c24] : memref<16x32xf32, #tpu.memory_space<vmem>>, vector<16x8xf32>
    tpu.vector_store %arg15[%c0_37, %c24], %112 {strides = array<i32>} : memref<16x32xf32, #tpu.memory_space<vmem>>, vector<16x8xf32>,
    %c0_38 = arith.constant 0 : index
    %c0_39 = arith.constant 0 : index
    %114 = vector.load %arg15[%c0_38, %c0_39] : memref<16x32xf32, #tpu.memory_space<vmem>>, vector<16x32xf32>
    %c0_40 = arith.constant 0 : index
    %c0_41 = arith.constant 0 : index
    %c0_42 = arith.constant 0 : index
    %115 = vector.load %arg6[%c0_40, %c0_41, %c0_42] : memref<1x32x32xf32, #tpu.memory_space<vmem>>, vector<1x32x32xf32>
    %116 = vector.shape_cast %115 : vector<1x32x32xf32> to vector<32x32xf32>
    %cst_43 = arith.constant dense<0.000000e+00> : vector<16x32xf32>
    %117 = tpu.matmul %114, %116, %cst_43 {dimension_numbers = #tpu.dot_dimension_numbers<[1], [0], [0], [1], [0, 0, 1, 1], [], []>} : vector<16x32xf32>, vector<32x32xf32>, vector<16x32xf32> -> vector<16x32xf32>
    %c0_44 = arith.constant 0 : index
    %c0_45 = arith.constant 0 : index
    %c0_46 = arith.constant 0 : index
    %118 = vector.load %arg7[%c0_44, %c0_45, %c0_46] : memref<1x1x32xf32, #tpu.memory_space<vmem>>, vector<1x1x32xf32>
    %119 = vector.shape_cast %118 : vector<1x1x32xf32> to vector<1x32xf32>
    %120 = vector.broadcast %119 : vector<1x32xf32> to vector<16x32xf32>
    %121 = arith.addf %117, %120 : vector<16x32xf32>
    %122 = arith.addf %4, %121 : vector<16x32xf32>
    %c0_47 = arith.constant 0 : index
    %c0_48 = arith.constant 0 : index
    %c0_49 = arith.constant 0 : index
    %123 = vector.load %arg8[%c0_47, %c0_48, %c0_49] : memref<1x1x32xf32, #tpu.memory_space<vmem>>, vector<1x1x32xf32>
    %124 = vector.shape_cast %123 : vector<1x1x32xf32> to vector<1x32xf32>
    %c0_50 = arith.constant 0 : index
    %c0_51 = arith.constant 0 : index
    %c0_52 = arith.constant 0 : index
    %125 = vector.load %arg9[%c0_50, %c0_51, %c0_52] : memref<1x1x32xf32, #tpu.memory_space<vmem>>, vector<1x1x32xf32>
    %126 = vector.shape_cast %125 : vector<1x1x32xf32> to vector<1x32xf32>
    %cst_53 = arith.constant dense<0.000000e+00> : vector<16xf32>
    %127 = vector.multi_reduction <add>, %122, %cst_53 [1] : vector<16x32xf32> to vector<16xf32>
    %128 = vector.shape_cast %127 : vector<16xf32> to vector<16x1xf32>
    %cst_54 = arith.constant 3.200000e+01 : f32
    %129 = vector.broadcast %cst_54 : f32 to vector<16x1xf32>
    %130 = arith.divf %128, %129 : vector<16x1xf32>
    %131 = vector.broadcast %130 : vector<16x1xf32> to vector<16x32xf32>
    %132 = arith.subf %122, %131 : vector<16x32xf32>
    %133 = arith.mulf %132, %132 : vector<16x32xf32>
    %cst_55 = arith.constant dense<0.000000e+00> : vector<16xf32>
    %134 = vector.multi_reduction <add>, %133, %cst_55 [1] : vector<16x32xf32> to vector<16xf32>
    %135 = vector.shape_cast %134 : vector<16xf32> to vector<16x1xf32>
    %cst_56 = arith.constant 3.200000e+01 : f32
    %136 = vector.broadcast %cst_56 : f32 to vector<16x1xf32>
    %137 = arith.divf %135, %136 : vector<16x1xf32>
    %138 = vector.broadcast %130 : vector<16x1xf32> to vector<16x32xf32>
    %139 = arith.subf %122, %138 : vector<16x32xf32>
    %cst_57 = arith.constant 9.99999974E-6 : f32
    %140 = vector.broadcast %cst_57 : f32 to vector<16x1xf32>
    %141 = arith.addf %137, %140 : vector<16x1xf32>
    %142 = math.rsqrt %141 : vector<16x1xf32>
    %143 = vector.broadcast %142 : vector<16x1xf32> to vector<16x32xf32>
    %144 = arith.mulf %139, %143 : vector<16x32xf32>
    %145 = vector.broadcast %124 : vector<1x32xf32> to vector<16x32xf32>
    %146 = arith.mulf %144, %145 : vector<16x32xf32>
    %147 = vector.broadcast %126 : vector<1x32xf32> to vector<16x32xf32>
    %148 = arith.addf %146, %147 : vector<16x32xf32>
    %c0_58 = arith.constant 0 : index
    %c0_59 = arith.constant 0 : index
    %c0_60 = arith.constant 0 : index
    %149 = vector.load %arg10[%c0_58, %c0_59, %c0_60] : memref<1x32x64xf32, #tpu.memory_space<vmem>>, vector<1x32x64xf32>
    %150 = vector.shape_cast %149 : vector<1x32x64xf32> to vector<32x64xf32>
    %cst_61 = arith.constant dense<0.000000e+00> : vector<16x64xf32>
    %151 = tpu.matmul %148, %150, %cst_61 {dimension_numbers = #tpu.dot_dimension_numbers<[1], [0], [0], [1], [0, 0, 1, 1], [], []>} : vector<16x32xf32>, vector<32x64xf32>, vector<16x64xf32> -> vector<16x64xf32>
    %c0_62 = arith.constant 0 : index
    %c0_63 = arith.constant 0 : index
    %c0_64 = arith.constant 0 : index
    %152 = vector.load %arg11[%c0_62, %c0_63, %c0_64] : memref<1x1x64xf32, #tpu.memory_space<vmem>>, vector<1x1x64xf32>
    %153 = vector.shape_cast %152 : vector<1x1x64xf32> to vector<1x64xf32>
    %154 = vector.broadcast %153 : vector<1x64xf32> to vector<16x64xf32>
    %155 = arith.addf %151, %154 : vector<16x64xf32>
    %cst_65 = arith.constant 5.000000e-01 : f32
    %156 = vector.broadcast %cst_65 : f32 to vector<16x64xf32>
    %157 = arith.mulf %156, %155 : vector<16x64xf32>
    %cst_66 = arith.constant 0.707106769 : f32
    %158 = vector.broadcast %cst_66 : f32 to vector<16x64xf32>
    %159 = arith.mulf %155, %158 : vector<16x64xf32>
    %cst_67 = arith.constant 0.000000e+00 : f32
    %160 = vector.broadcast %cst_67 : f32 to vector<16x64xf32>
    %161 = arith.cmpf oge, %159, %160 : vector<16x64xf32>
    %cst_68 = arith.constant 1.000000e+00 : f32
    %cst_69 = arith.constant -1.000000e+00 : f32
    %162 = vector.broadcast %cst_68 : f32 to vector<16x64xf32>
    %163 = vector.broadcast %cst_69 : f32 to vector<16x64xf32>
    %164 = arith.select %161, %162, %163 : vector<16x64xi1>, vector<16x64xf32>
    %165 = math.absf %159 : vector<16x64xf32>
    %cst_70 = arith.constant 0.327591091 : f32
    %166 = vector.broadcast %cst_70 : f32 to vector<16x64xf32>
    %167 = arith.mulf %166, %165 : vector<16x64xf32>
    %cst_71 = arith.constant 1.000000e+00 : f32
    %168 = vector.broadcast %cst_71 : f32 to vector<16x64xf32>
    %169 = arith.addf %168, %167 : vector<16x64xf32>
    %cst_72 = arith.constant 1.000000e+00 : f32
    %170 = vector.broadcast %cst_72 : f32 to vector<16x64xf32>
    %171 = arith.divf %170, %169 : vector<16x64xf32>
    %cst_73 = arith.constant 1.06140542 : f32
    %172 = vector.broadcast %cst_73 : f32 to vector<16x64xf32>
    %173 = arith.mulf %172, %171 : vector<16x64xf32>
    %cst_74 = arith.constant -1.45315206 : f32
    %174 = vector.broadcast %cst_74 : f32 to vector<16x64xf32>
    %175 = arith.addf %173, %174 : vector<16x64xf32>
    %176 = arith.mulf %175, %171 : vector<16x64xf32>
    %cst_75 = arith.constant 1.42141378 : f32
    %177 = vector.broadcast %cst_75 : f32 to vector<16x64xf32>
    %178 = arith.addf %176, %177 : vector<16x64xf32>
    %179 = arith.mulf %178, %171 : vector<16x64xf32>
    %cst_76 = arith.constant -0.284496725 : f32
    %180 = vector.broadcast %cst_76 : f32 to vector<16x64xf32>
    %181 = arith.addf %179, %180 : vector<16x64xf32>
    %182 = arith.mulf %181, %171 : vector<16x64xf32>
    %cst_77 = arith.constant 0.254829586 : f32
    %183 = vector.broadcast %cst_77 : f32 to vector<16x64xf32>
    %184 = arith.addf %182, %183 : vector<16x64xf32>
    %185 = arith.mulf %184, %171 : vector<16x64xf32>
    %cst_78 = arith.constant 0.000000e+00 : f32
    %186 = vector.broadcast %cst_78 : f32 to vector<16x64xf32>
    %187 = arith.subf %186, %165 : vector<16x64xf32>
    %188 = arith.mulf %187, %165 : vector<16x64xf32>
    %189 = math.exp %188 : vector<16x64xf32>
    %190 = arith.mulf %185, %189 : vector<16x64xf32>
    %cst_79 = arith.constant 1.000000e+00 : f32
    %191 = vector.broadcast %cst_79 : f32 to vector<16x64xf32>
    %192 = arith.subf %191, %190 : vector<16x64xf32>
    %193 = arith.mulf %164, %192 : vector<16x64xf32>
    %cst_80 = arith.constant 1.000000e+00 : f32
    %194 = vector.broadcast %cst_80 : f32 to vector<16x64xf32>
    %195 = arith.addf %194, %193 : vector<16x64xf32>
    %196 = arith.mulf %157, %195 : vector<16x64xf32>
    %c0_81 = arith.constant 0 : index
    %c0_82 = arith.constant 0 : index
    %c0_83 = arith.constant 0 : index
    %197 = vector.load %arg12[%c0_81, %c0_82, %c0_83] : memref<1x64x32xf32, #tpu.memory_space<vmem>>, vector<1x64x32xf32>
    %198 = vector.shape_cast %197 : vector<1x64x32xf32> to vector<64x32xf32>
    %cst_84 = arith.constant dense<0.000000e+00> : vector<16x32xf32>
    %199 = tpu.matmul %196, %198, %cst_84 {dimension_numbers = #tpu.dot_dimension_numbers<[1], [0], [0], [1], [0, 0, 1, 1], [], []>} : vector<16x64xf32>, vector<64x32xf32>, vector<16x32xf32> -> vector<16x32xf32>
    %c0_85 = arith.constant 0 : index
    %c0_86 = arith.constant 0 : index
    %c0_87 = arith.constant 0 : index
    %200 = vector.load %arg13[%c0_85, %c0_86, %c0_87] : memref<1x1x32xf32, #tpu.memory_space<vmem>>, vector<1x1x32xf32>
    %201 = vector.shape_cast %200 : vector<1x1x32xf32> to vector<1x32xf32>
    %202 = vector.broadcast %201 : vector<1x32xf32> to vector<16x32xf32>
    %203 = arith.addf %199, %202 : vector<16x32xf32>
    %204 = arith.addf %122, %203 : vector<16x32xf32>
    %205 = vector.shape_cast %204 : vector<16x32xf32> to vector<2x8x32xf32>
    %c0_88 = arith.constant 0 : index
    %c0_89 = arith.constant 0 : index
    %c0_90 = arith.constant 0 : index
    %206 = vector.load %arg14[%c0_88, %c0_89, %c0_90] : memref<2x8x32xf32, #tpu.memory_space<vmem>>, vector<2x8x32xf32>
    tpu.vector_store %arg14[%c0_88, %c0_89, %c0_90], %205 {strides = array<i32>} : memref<2x8x32xf32, #tpu.memory_space<vmem>>, vector<2x8x32xf32>,
    return
  }
  func.func @transform_0(%arg0: i32, %arg1: i32) -> (i32, i32, i32) {
    %c0_i32 = arith.constant 0 : i32
    %c0_i32_0 = arith.constant 0 : i32
    %c0_i32_1 = arith.constant 0 : i32
    return %arg0, %c0_i32, %c0_i32_0 : i32, i32, i32
  }
  func.func @transform_1(%arg0: i32, %arg1: i32) -> (i32, i32, i32) {
    %c0_i32 = arith.constant 0 : i32
    %c0_i32_0 = arith.constant 0 : i32
    %c0_i32_1 = arith.constant 0 : i32
    return %arg1, %c0_i32, %c0_i32_0 : i32, i32, i32
  }
  func.func @transform_2(%arg0: i32, %arg1: i32) -> (i32, i32, i32) {
    %c0_i32 = arith.constant 0 : i32
    %c0_i32_0 = arith.constant 0 : i32
    %c0_i32_1 = arith.constant 0 : i32
    return %arg1, %c0_i32, %c0_i32_0 : i32, i32, i32
  }
  func.func @transform_3(%arg0: i32, %arg1: i32) -> (i32, i32, i32) {
    %c0_i32 = arith.constant 0 : i32
    %c0_i32_0 = arith.constant 0 : i32
    %c0_i32_1 = arith.constant 0 : i32
    return %arg1, %c0_i32, %c0_i32_0 : i32, i32, i32
  }
  func.func @transform_4(%arg0: i32, %arg1: i32) -> (i32, i32, i32) {
    %c0_i32 = arith.constant 0 : i32
    %c0_i32_0 = arith.constant 0 : i32
    %c0_i32_1 = arith.constant 0 : i32
    return %arg1, %c0_i32, %c0_i32_0 : i32, i32, i32
  }
  func.func @transform_5(%arg0: i32, %arg1: i32) -> (i32, i32, i32) {
    %c0_i32 = arith.constant 0 : i32
    %c0_i32_0 = arith.constant 0 : i32
    %c0_i32_1 = arith.constant 0 : i32
    return %arg1, %c0_i32, %c0_i32_0 : i32, i32, i32
  }
  func.func @transform_6(%arg0: i32, %arg1: i32) -> (i32, i32, i32) {
    %c0_i32 = arith.constant 0 : i32
    %c0_i32_0 = arith.constant 0 : i32
    %c0_i32_1 = arith.constant 0 : i32
    return %arg1, %c0_i32, %c0_i32_0 : i32, i32, i32
  }
  func.func @transform_7(%arg0: i32, %arg1: i32) -> (i32, i32, i32) {
    %c0_i32 = arith.constant 0 : i32
    %c0_i32_0 = arith.constant 0 : i32
    %c0_i32_1 = arith.constant 0 : i32
    return %arg1, %c0_i32, %c0_i32_0 : i32, i32, i32
  }
  func.func @transform_8(%arg0: i32, %arg1: i32) -> (i32, i32, i32) {
    %c0_i32 = arith.constant 0 : i32
    %c0_i32_0 = arith.constant 0 : i32
    %c0_i32_1 = arith.constant 0 : i32
    return %arg1, %c0_i32, %c0_i32_0 : i32, i32, i32
  }
  func.func @transform_9(%arg0: i32, %arg1: i32) -> (i32, i32, i32) {
    %c0_i32 = arith.constant 0 : i32
    %c0_i32_0 = arith.constant 0 : i32
    %c0_i32_1 = arith.constant 0 : i32
    return %arg1, %c0_i32, %c0_i32_0 : i32, i32, i32
  }
  func.func @transform_10(%arg0: i32, %arg1: i32) -> (i32, i32, i32) {
    %c0_i32 = arith.constant 0 : i32
    %c0_i32_0 = arith.constant 0 : i32
    %c0_i32_1 = arith.constant 0 : i32
    return %arg1, %c0_i32, %c0_i32_0 : i32, i32, i32
  }
  func.func @transform_11(%arg0: i32, %arg1: i32) -> (i32, i32, i32) {
    %c0_i32 = arith.constant 0 : i32
    %c0_i32_0 = arith.constant 0 : i32
    %c0_i32_1 = arith.constant 0 : i32
    return %arg1, %c0_i32, %c0_i32_0 : i32, i32, i32
  }
  func.func @transform_12(%arg0: i32, %arg1: i32) -> (i32, i32, i32) {
    %c0_i32 = arith.constant 0 : i32
    %c0_i32_0 = arith.constant 0 : i32
    %c0_i32_1 = arith.constant 0 : i32
    return %arg0, %c0_i32, %c0_i32_0 : i32, i32, i32
  }
}

</mosaic_0001>

<llo_original>
// kernel: tpu_custom_call.1
$region0: #{tpu_custom_call.1}
  #allocation0 [shape = 'u32[]', space=smem, size = 0x4, offset = 0x4, fixed_abs, tag = 'smem constant byte address 0x4 - core index']
  #allocation1 [shape = 'u32[144,128]{1,0:T(1,128)}', space=vmem, size = 0x12000, scoped, tag = 'internal scratch']
  #allocation2 [shape = 'f32[16,32]{1,0:T(8,128)}', space=vmem, size = 0x2000, scoped, tag = 'scratch operand']
  %s0 = inlined_call_operand.hbm [shape: f32[2,8,32], index: 0, kind: input, shape index: {}]
  %s1 = inlined_call_operand.hbm [shape: f32[2,1,32], index: 1, kind: input, shape index: {}]
  %s2 = inlined_call_operand.vmem [shape: f32[2,1,32], index: 2, kind: input, shape index: {}]
  %s3 = inlined_call_operand.vmem [shape: f32[2,32,96], index: 3, kind: input, shape index: {}]
  %s4 = inlined_call_operand.vmem [shape: f32[2,32,32], index: 4, kind: input, shape index: {}]
  %s5 = inlined_call_operand.vmem [shape: f32[2,1,32], index: 5, kind: input, shape index: {}]
  %s6 = inlined_call_operand.vmem [shape: f32[2,1,32], index: 6, kind: input, shape index: {}]
  %s7 = inlined_call_operand.vmem [shape: f32[2,1,32], index: 7, kind: input, shape index: {}]
  %s8 = inlined_call_operand.vmem [shape: f32[2,32,64], index: 8, kind: input, shape index: {}]
  %s9 = inlined_call_operand.vmem [shape: f32[2,1,64], index: 9, kind: input, shape index: {}]
  %s10 = inlined_call_operand.vmem [shape: f32[2,64,32], index: 10, kind: input, shape index: {}]
  %s11 = inlined_call_operand.vmem [shape: f32[2,1,32], index: 11, kind: input, shape index: {}]
  %s12 = inlined_call_operand.hbm [shape: f32[2,8,32], index: 12, kind: output, shape index: {}]
  %s13 = sld [smem:[#allocation0]]
  $region93: #{tpu_custom_call.1} parent=0
    _
  %s15 = ssub.s32 1, %s13
  %s16 = scalar_select 0, %s15, %s13
  $region1: #{tpu_custom_call.1} parent=0
    #allocation3 [shape = 'u8[8192]{0}', space=vmem, size = 0x2000, scoped, tag = 'input window, operand 0, single buffered']
    #allocation4 [shape = 's32[2]{0}', space=sflag, size = 0x8, scoped, tag = 'scoped memory for tpu_custom_call.1']
    #allocation5 [shape = 's32[2]{0}', space=sflag, size = 0x8, scoped, tag = 'scoped memory for tpu_custom_call.1']
    #allocation6 [shape = 'u8[1024]{0}', space=vmem, size = 0x400, scoped, tag = 'input window, operand 1']
    #allocation7 [shape = 's32[2]{0}', space=sflag, size = 0x8, scoped, tag = 'scoped memory for tpu_custom_call.1']
    #allocation8 [shape = 'u8[8192]{0}', space=vmem, size = 0x2000, scoped, tag = 'output window, operand 0, single buffered']
    %17 = vsyncpa [#allocation4], 0
    %18 = vsyncpa [#allocation7], 0
    %s19 = scalar_lea.sflag [#allocation7], 1
    %20 = vsyncpa %s19, 0
    %21 = vsyncpa [#allocation5], 0
    loop: start=0, step=1, limit=4
    $region2: #{tpu_custom_call.1} parent=1 // loop_pre_header
      _
    $region3: #{tpu_custom_call.1} parent=1 // loop_header
      %s23 = sphi 0, %s27
      %p24 = scmp.ge.s32.totalorder %s23, 4
      %s30 = sphi 0, %s42
      %s31 = sphi 0, %s38
      %s32 = sphi 0, %s30
      %s33 = sphi 0, %s31
      %s34 = sphi 0, %s32
      %s35 = sphi 0, %s33
      %s45 = sphi 0, %s47
      %s48 = sphi 0, %s45
      %s49 = sphi 0, %s48
      %s65 = sphi 0, %s49
      %s71 = sphi 0, %s73
      %s74 = sphi 0, %s71
      %s75 = sphi 0, %s74
      %s91 = sphi 0, %s75
      %s97 = sphi 0, %s99
      %s100 = sphi 0, %s97
      %s101 = sphi 0, %s100
      %s117 = sphi 0, %s101
      %s123 = sphi 0, %s125
      %s126 = sphi 0, %s123
      %s127 = sphi 0, %s126
      %s143 = sphi 0, %s127
      %s149 = sphi 0, %s151
      %s152 = sphi 0, %s149
      %s153 = sphi 0, %s152
      %s169 = sphi 0, %s153
      %s175 = sphi 0, %s177
      %s178 = sphi 0, %s175
      %s179 = sphi 0, %s178
      %s195 = sphi 0, %s179
      %s201 = sphi 0, %s203
      %s204 = sphi 0, %s201
      %s205 = sphi 0, %s204
      %s221 = sphi 0, %s205
      %s227 = sphi 0, %s229
      %s230 = sphi 0, %s227
      %s231 = sphi 0, %s230
      %s247 = sphi 0, %s231
      %s253 = sphi 0, %s255
      %s256 = sphi 0, %s253
      %s257 = sphi 0, %s256
      %s273 = sphi 0, %s257
      %s279 = sphi 0, %s281
      %s282 = sphi 0, %s279
      %s283 = sphi 0, %s282
      %s299 = sphi 0, %s283
      %s305 = sphi 0, %s307
      %s308 = sphi 0, %s305
      %s309 = sphi 0, %s308
      %s325 = sphi 0, %s309
      %s331 = sphi 0, %s333
      %s334 = sphi 0, %s331
      %s335 = sphi 0, %s334
      %s351 = sphi 0, %s335
      %s357 = sphi 0, %s359
      %s360 = sphi 0, %s357
      %s361 = sphi 0, %s360
      %s377 = sphi 0, %s361
    $region4: #{tpu_custom_call.1} parent=1 // loop_header_branch
      %26 = sbr.rel (%p24) target = $region8
    $region5: #{tpu_custom_call.1} parent=1 // loop_body
      %s28 = ssub.s32 %s23, 1
      %s29 = ssub.s32 %s23, 2
      %s36 = sadd.s32 1, %s31
      %p37 = scmp.ge.s32.totalorder %s36, 2
      %s38 = scalar_select %p37, 0, %s36
      %s39 = sadd.s32 1, %s30
      %s40 = scalar_select %p37, %s39, %s30
      %p41 = scmp.ge.s32.totalorder %s40, 1
      %s42 = scalar_select %p41, 0, %s40
      %s43 = ssub.s32 %s30, %s42
      %p44 = scmp.eq.s32.totalorder %s43, 0
      %s46 = sadd.s32 %s45, 1
      %s47 = scalar_select %p44, %s45, %s46
      %p50 = pneg %p44
      %p51 = scmp.eq.s32.totalorder %s23, 1
      %p52 = por %p50, %p51
      %p53 = scmp.ne.s32.totalorder %s45, %s48
      %p54 = scmp.eq.s32.totalorder %s23, 0
      %p55 = por %p53, %p54
      %p56 = scmp.ne.s32.totalorder %s45, %s48
      %p57 = scmp.eq.s32.totalorder %s28, 1
      %p58 = por %p56, %p57
      %p59 = scmp.ne.s32.totalorder %s48, %s49
      %p60 = scmp.eq.s32.totalorder %s28, 0
      %p61 = por %p59, %p60
      %p62 = scmp.ne.s32.totalorder %s48, %s49
      %p63 = scmp.eq.s32.totalorder %s29, 1
      %p64 = por %p62, %p63
      %p66 = scmp.ne.s32.totalorder %s49, %s65
      %p67 = scmp.eq.s32.totalorder %s29, 0
      %p68 = por %p66, %p67
      %s69 = ssub.s32 %s31, %s38
      %p70 = scmp.eq.s32.totalorder %s69, 0
      %s72 = sadd.s32 %s71, 1
      %s73 = scalar_select %p70, %s71, %s72
      %p76 = pneg %p70
      %p77 = scmp.eq.s32.totalorder %s23, 1
      %p78 = por %p76, %p77
      %p79 = scmp.ne.s32.totalorder %s71, %s74
      %p80 = scmp.eq.s32.totalorder %s23, 0
      %p81 = por %p79, %p80
      %p82 = scmp.ne.s32.totalorder %s71, %s74
      %p83 = scmp.eq.s32.totalorder %s28, 1
      %p84 = por %p82, %p83
      %p85 = scmp.ne.s32.totalorder %s74, %s75
      %p86 = scmp.eq.s32.totalorder %s28, 0
      %p87 = por %p85, %p86
      %p88 = scmp.ne.s32.totalorder %s74, %s75
      %p89 = scmp.eq.s32.totalorder %s29, 1
      %p90 = por %p88, %p89
      %p92 = scmp.ne.s32.totalorder %s75, %s91
      %p93 = scmp.eq.s32.totalorder %s29, 0
      %p94 = por %p92, %p93
      %s95 = ssub.s32 %s31, %s38
      %p96 = scmp.eq.s32.totalorder %s95, 0
      %s98 = sadd.s32 %s97, 1
      %s99 = scalar_select %p96, %s97, %s98
      %p102 = pneg %p96
      %p103 = scmp.eq.s32.totalorder %s23, 1
      %p104 = por %p102, %p103
      %p105 = scmp.ne.s32.totalorder %s97, %s100
      %p106 = scmp.eq.s32.totalorder %s23, 0
      %p107 = por %p105, %p106
      %p108 = scmp.ne.s32.totalorder %s97, %s100
      %p109 = scmp.eq.s32.totalorder %s28, 1
      %p110 = por %p108, %p109
      %p111 = scmp.ne.s32.totalorder %s100, %s101
      %p112 = scmp.eq.s32.totalorder %s28, 0
      %p113 = por %p111, %p112
      %p114 = scmp.ne.s32.totalorder %s100, %s101
      %p115 = scmp.eq.s32.totalorder %s29, 1
      %p116 = por %p114, %p115
      %p118 = scmp.ne.s32.totalorder %s101, %s117
      %p119 = scmp.eq.s32.totalorder %s29, 0
      %p120 = por %p118, %p119
      %s121 = ssub.s32 %s31, %s38
      %p122 = scmp.eq.s32.totalorder %s121, 0
      %s124 = sadd.s32 %s123, 1
      %s125 = scalar_select %p122, %s123, %s124
      %p128 = pneg %p122
      %p129 = scmp.eq.s32.totalorder %s23, 1
      %p130 = por %p128, %p129
      %p131 = scmp.ne.s32.totalorder %s123, %s126
      %p132 = scmp.eq.s32.totalorder %s23, 0
      %p133 = por %p131, %p132
      %p134 = scmp.ne.s32.totalorder %s123, %s126
      %p135 = scmp.eq.s32.totalorder %s28, 1
      %p136 = por %p134, %p135
      %p137 = scmp.ne.s32.totalorder %s126, %s127
      %p138 = scmp.eq.s32.totalorder %s28, 0
      %p139 = por %p137, %p138
      %p140 = scmp.ne.s32.totalorder %s126, %s127
      %p141 = scmp.eq.s32.totalorder %s29, 1
      %p142 = por %p140, %p141
      %p144 = scmp.ne.s32.totalorder %s127, %s143
      %p145 = scmp.eq.s32.totalorder %s29, 0
      %p146 = por %p144, %p145
      %s147 = ssub.s32 %s31, %s38
      %p148 = scmp.eq.s32.totalorder %s147, 0
      %s150 = sadd.s32 %s149, 1
      %s151 = scalar_select %p148, %s149, %s150
      %p154 = pneg %p148
      %p155 = scmp.eq.s32.totalorder %s23, 1
      %p156 = por %p154, %p155
      %p157 = scmp.ne.s32.totalorder %s149, %s152
      %p158 = scmp.eq.s32.totalorder %s23, 0
      %p159 = por %p157, %p158
      %p160 = scmp.ne.s32.totalorder %s149, %s152
      %p161 = scmp.eq.s32.totalorder %s28, 1
      %p162 = por %p160, %p161
      %p163 = scmp.ne.s32.totalorder %s152, %s153
      %p164 = scmp.eq.s32.totalorder %s28, 0
      %p165 = por %p163, %p164
      %p166 = scmp.ne.s32.totalorder %s152, %s153
      %p167 = scmp.eq.s32.totalorder %s29, 1
      %p168 = por %p166, %p167
      %p170 = scmp.ne.s32.totalorder %s153, %s169
      %p171 = scmp.eq.s32.totalorder %s29, 0
      %p172 = por %p170, %p171
      %s173 = ssub.s32 %s31, %s38
      %p174 = scmp.eq.s32.totalorder %s173, 0
      %s176 = sadd.s32 %s175, 1
      %s177 = scalar_select %p174, %s175, %s176
      %p180 = pneg %p174
      %p181 = scmp.eq.s32.totalorder %s23, 1
      %p182 = por %p180, %p181
      %p183 = scmp.ne.s32.totalorder %s175, %s178
      %p184 = scmp.eq.s32.totalorder %s23, 0
      %p185 = por %p183, %p184
      %p186 = scmp.ne.s32.totalorder %s175, %s178
      %p187 = scmp.eq.s32.totalorder %s28, 1
      %p188 = por %p186, %p187
      %p189 = scmp.ne.s32.totalorder %s178, %s179
      %p190 = scmp.eq.s32.totalorder %s28, 0
      %p191 = por %p189, %p190
      %p192 = scmp.ne.s32.totalorder %s178, %s179
      %p193 = scmp.eq.s32.totalorder %s29, 1
      %p194 = por %p192, %p193
      %p196 = scmp.ne.s32.totalorder %s179, %s195
      %p197 = scmp.eq.s32.totalorder %s29, 0
      %p198 = por %p196, %p197
      %s199 = ssub.s32 %s31, %s38
      %p200 = scmp.eq.s32.totalorder %s199, 0
      %s202 = sadd.s32 %s201, 1
      %s203 = scalar_select %p200, %s201, %s202
      %p206 = pneg %p200
      %p207 = scmp.eq.s32.totalorder %s23, 1
      %p208 = por %p206, %p207
      %p209 = scmp.ne.s32.totalorder %s201, %s204
      %p210 = scmp.eq.s32.totalorder %s23, 0
      %p211 = por %p209, %p210
      %p212 = scmp.ne.s32.totalorder %s201, %s204
      %p213 = scmp.eq.s32.totalorder %s28, 1
      %p214 = por %p212, %p213
      %p215 = scmp.ne.s32.totalorder %s204, %s205
      %p216 = scmp.eq.s32.totalorder %s28, 0
      %p217 = por %p215, %p216
      %p218 = scmp.ne.s32.totalorder %s204, %s205
      %p219 = scmp.eq.s32.totalorder %s29, 1
      %p220 = por %p218, %p219
      %p222 = scmp.ne.s32.totalorder %s205, %s221
      %p223 = scmp.eq.s32.totalorder %s29, 0
      %p224 = por %p222, %p223
      %s225 = ssub.s32 %s31, %s38
      %p226 = scmp.eq.s32.totalorder %s225, 0
      %s228 = sadd.s32 %s227, 1
      %s229 = scalar_select %p226, %s227, %s228
      %p232 = pneg %p226
      %p233 = scmp.eq.s32.totalorder %s23, 1
      %p234 = por %p232, %p233
      %p235 = scmp.ne.s32.totalorder %s227, %s230
      %p236 = scmp.eq.s32.totalorder %s23, 0
      %p237 = por %p235, %p236
      %p238 = scmp.ne.s32.totalorder %s227, %s230
      %p239 = scmp.eq.s32.totalorder %s28, 1
      %p240 = por %p238, %p239
      %p241 = scmp.ne.s32.totalorder %s230, %s231
      %p242 = scmp.eq.s32.totalorder %s28, 0
      %p243 = por %p241, %p242
      %p244 = scmp.ne.s32.totalorder %s230, %s231
      %p245 = scmp.eq.s32.totalorder %s29, 1
      %p246 = por %p244, %p245
      %p248 = scmp.ne.s32.totalorder %s231, %s247
      %p249 = scmp.eq.s32.totalorder %s29, 0
      %p250 = por %p248, %p249
      %s251 = ssub.s32 %s31, %s38
      %p252 = scmp.eq.s32.totalorder %s251, 0
      %s254 = sadd.s32 %s253, 1
      %s255 = scalar_select %p252, %s253, %s254
      %p258 = pneg %p252
      %p259 = scmp.eq.s32.totalorder %s23, 1
      %p260 = por %p258, %p259
      %p261 = scmp.ne.s32.totalorder %s253, %s256
      %p262 = scmp.eq.s32.totalorder %s23, 0
      %p263 = por %p261, %p262
      %p264 = scmp.ne.s32.totalorder %s253, %s256
      %p265 = scmp.eq.s32.totalorder %s28, 1
      %p266 = por %p264, %p265
      %p267 = scmp.ne.s32.totalorder %s256, %s257
      %p268 = scmp.eq.s32.totalorder %s28, 0
      %p269 = por %p267, %p268
      %p270 = scmp.ne.s32.totalorder %s256, %s257
      %p271 = scmp.eq.s32.totalorder %s29, 1
      %p272 = por %p270, %p271
      %p274 = scmp.ne.s32.totalorder %s257, %s273
      %p275 = scmp.eq.s32.totalorder %s29, 0
      %p276 = por %p274, %p275
      %s277 = ssub.s32 %s31, %s38
      %p278 = scmp.eq.s32.totalorder %s277, 0
      %s280 = sadd.s32 %s279, 1
      %s281 = scalar_select %p278, %s279, %s280
      %p284 = pneg %p278
      %p285 = scmp.eq.s32.totalorder %s23, 1
      %p286 = por %p284, %p285
      %p287 = scmp.ne.s32.totalorder %s279, %s282
      %p288 = scmp.eq.s32.totalorder %s23, 0
      %p289 = por %p287, %p288
      %p290 = scmp.ne.s32.totalorder %s279, %s282
      %p291 = scmp.eq.s32.totalorder %s28, 1
      %p292 = por %p290, %p291
      %p293 = scmp.ne.s32.totalorder %s282, %s283
      %p294 = scmp.eq.s32.totalorder %s28, 0
      %p295 = por %p293, %p294
      %p296 = scmp.ne.s32.totalorder %s282, %s283
      %p297 = scmp.eq.s32.totalorder %s29, 1
      %p298 = por %p296, %p297
      %p300 = scmp.ne.s32.totalorder %s283, %s299
      %p301 = scmp.eq.s32.totalorder %s29, 0
      %p302 = por %p300, %p301
      %s303 = ssub.s32 %s31, %s38
      %p304 = scmp.eq.s32.totalorder %s303, 0
      %s306 = sadd.s32 %s305, 1
      %s307 = scalar_select %p304, %s305, %s306
      %p310 = pneg %p304
      %p311 = scmp.eq.s32.totalorder %s23, 1
      %p312 = por %p310, %p311
      %p313 = scmp.ne.s32.totalorder %s305, %s308
      %p314 = scmp.eq.s32.totalorder %s23, 0
      %p315 = por %p313, %p314
      %p316 = scmp.ne.s32.totalorder %s305, %s308
      %p317 = scmp.eq.s32.totalorder %s28, 1
      %p318 = por %p316, %p317
      %p319 = scmp.ne.s32.totalorder %s308, %s309
      %p320 = scmp.eq.s32.totalorder %s28, 0
      %p321 = por %p319, %p320
      %p322 = scmp.ne.s32.totalorder %s308, %s309
      %p323 = scmp.eq.s32.totalorder %s29, 1
      %p324 = por %p322, %p323
      %p326 = scmp.ne.s32.totalorder %s309, %s325
      %p327 = scmp.eq.s32.totalorder %s29, 0
      %p328 = por %p326, %p327
      %s329 = ssub.s32 %s31, %s38
      %p330 = scmp.eq.s32.totalorder %s329, 0
      %s332 = sadd.s32 %s331, 1
      %s333 = scalar_select %p330, %s331, %s332
      %p336 = pneg %p330
      %p337 = scmp.eq.s32.totalorder %s23, 1
      %p338 = por %p336, %p337
      %p339 = scmp.ne.s32.totalorder %s331, %s334
      %p340 = scmp.eq.s32.totalorder %s23, 0
      %p341 = por %p339, %p340
      %p342 = scmp.ne.s32.totalorder %s331, %s334
      %p343 = scmp.eq.s32.totalorder %s28, 1
      %p344 = por %p342, %p343
      %p345 = scmp.ne.s32.totalorder %s334, %s335
      %p346 = scmp.eq.s32.totalorder %s28, 0
      %p347 = por %p345, %p346
      %p348 = scmp.ne.s32.totalorder %s334, %s335
      %p349 = scmp.eq.s32.totalorder %s29, 1
      %p350 = por %p348, %p349
      %p352 = scmp.ne.s32.totalorder %s335, %s351
      %p353 = scmp.eq.s32.totalorder %s29, 0
      %p354 = por %p352, %p353
      %s355 = ssub.s32 %s30, %s42
      %p356 = scmp.eq.s32.totalorder %s355, 0
      %s358 = sadd.s32 %s357, 1
      %s359 = scalar_select %p356, %s357, %s358
      %p362 = pneg %p356
      %p363 = scmp.eq.s32.totalorder %s23, 1
      %p364 = por %p362, %p363
      %p365 = scmp.ne.s32.totalorder %s357, %s360
      %p366 = scmp.eq.s32.totalorder %s23, 0
      %p367 = por %p365, %p366
      %p368 = scmp.ne.s32.totalorder %s357, %s360
      %p369 = scmp.eq.s32.totalorder %s28, 1
      %p370 = por %p368, %p369
      %p371 = scmp.ne.s32.totalorder %s360, %s361
      %p372 = scmp.eq.s32.totalorder %s28, 0
      %p373 = por %p371, %p372
      %p374 = scmp.ne.s32.totalorder %s360, %s361
      %p375 = scmp.eq.s32.totalorder %s29, 1
      %p376 = por %p374, %p375
      %p378 = scmp.ne.s32.totalorder %s361, %s377
      %p379 = scmp.eq.s32.totalorder %s29, 0
      %p380 = por %p378, %p379
      %p381 = scmp.le.s32.totalorder 1, %s23
      %p382 = scmp.lt.s32.totalorder %s23, 3
      %p383 = pnand %p381, %p382
      %p384 = pneg %p383
      // Predicated region
      $region9: #{tpu_custom_call.1} parent=5 // pred_check
        _
      $region10: #{tpu_custom_call.1} parent=5 // pred_check_branch
        %386 = sbr.rel (%p383) target = $region12
      $region11: #{tpu_custom_call.1} parent=5 // pred_region
        %s387 = ssub.s32 %s23, 1
        // Predicated region
        $region13: #{tpu_custom_call.1} parent=11 // pred_check
          %p388 = pneg %p61
        $region14: #{tpu_custom_call.1} parent=11 // pred_check_branch
          %390 = sbr.rel (%p388) target = $region16
        $region15: #{tpu_custom_call.1} parent=11 // pred_region
          %s391 = smul.u32 2, %s32
          %s393 = ssub.s32 256, 256
          %394 = vsyncadd [#allocation4], %s393
          %s395 = smul.addr %s391, 128
          %s396 = scalar_lea.hbm %s0, %s395
          %s397 = sshll.u32 [#allocation3], 4
          %s398 = int_to_ptr.vmem [resolvable:$true] %s397
          %403 = dma.hbm_to_vmem [thread:$0]  %s396, 256, %s398, [#allocation4], 128, 128, 8
        $region16: #{tpu_custom_call.1} parent=11 // pred_fallthru
          _
      $region12: #{tpu_custom_call.1} parent=5 // pred_fallthru
        _
      %p404 = scmp.lt.s32.totalorder %s23, 2
      // Predicated region
      $region17: #{tpu_custom_call.1} parent=5 // pred_check
        %p405 = pneg %p404
      $region18: #{tpu_custom_call.1} parent=5 // pred_check_branch
        %407 = sbr.rel (%p405) target = $region20
      $region19: #{tpu_custom_call.1} parent=5 // pred_region
        // Predicated region
        $region21: #{tpu_custom_call.1} parent=19 // pred_check
          %p408 = pneg %p81
        $region22: #{tpu_custom_call.1} parent=19 // pred_check_branch
          %410 = sbr.rel (%p408) target = $region24
        $region23: #{tpu_custom_call.1} parent=19 // pred_region
          %s411 = sand.u32 %s71, 1
          %s412 = scalar_lea.sflag [#allocation7], %s411
          %s413 = sand.u32 %s71, 1
          %s414 = scalar_lea.vmem [#allocation6], %s413
          %s416 = ssub.s32 16, 16
          %417 = vsyncadd %s412, %s416
          %s418 = smul.addr %s31, 16
          %s419 = scalar_lea.hbm %s1, %s418
          %s421 = sshll.u32 %s414, 4
          %s422 = int_to_ptr.vmem [resolvable:$true] %s421
          %424 = dma.hbm_to_vmem [thread:$0]  %s419, 16, %s422, %s412
        $region24: #{tpu_custom_call.1} parent=19 // pred_fallthru
          _
        // Predicated region
        $region25: #{tpu_custom_call.1} parent=19 // pred_check
          %p425 = pneg %p107
        $region26: #{tpu_custom_call.1} parent=19 // pred_check_branch
          %427 = sbr.rel (%p425) target = $region28
        $region27: #{tpu_custom_call.1} parent=19 // pred_region
          %p428 = scmp.lt.s32.totalorder %s31, 1
          %s429 = scalar_select %p428, %s31, 1
          %s430 = scalar_lea.vmem %s2, %s429
        $region28: #{tpu_custom_call.1} parent=19 // pred_fallthru
          _
        // Predicated region
        $region29: #{tpu_custom_call.1} parent=19 // pred_check
          %p431 = pneg %p133
        $region30: #{tpu_custom_call.1} parent=19 // pred_check_branch
          %433 = sbr.rel (%p431) target = $region32
        $region31: #{tpu_custom_call.1} parent=19 // pred_region
          %p434 = scmp.lt.s32.totalorder %s31, 1
          %s435 = scalar_select %p434, %s31, 1
          %s436 = smul.addr %s435, 4
          %s437 = smul.addr %s436, 8
          %s438 = scalar_lea.vmem %s3, %s437
        $region32: #{tpu_custom_call.1} parent=19 // pred_fallthru
          _
        // Predicated region
        $region33: #{tpu_custom_call.1} parent=19 // pred_check
          %p439 = pneg %p159
        $region34: #{tpu_custom_call.1} parent=19 // pred_check_branch
          %441 = sbr.rel (%p439) target = $region36
        $region35: #{tpu_custom_call.1} parent=19 // pred_region
          %p442 = scmp.lt.s32.totalorder %s31, 1
          %s443 = scalar_select %p442, %s31, 1
          %s444 = smul.addr %s443, 4
          %s445 = smul.addr %s444, 8
          %s446 = scalar_lea.vmem %s4, %s445
        $region36: #{tpu_custom_call.1} parent=19 // pred_fallthru
          _
        // Predicated region
        $region37: #{tpu_custom_call.1} parent=19 // pred_check
          %p447 = pneg %p185
        $region38: #{tpu_custom_call.1} parent=19 // pred_check_branch
          %449 = sbr.rel (%p447) target = $region40
        $region39: #{tpu_custom_call.1} parent=19 // pred_region
          %p450 = scmp.lt.s32.totalorder %s31, 1
          %s451 = scalar_select %p450, %s31, 1
          %s452 = scalar_lea.vmem %s5, %s451
        $region40: #{tpu_custom_call.1} parent=19 // pred_fallthru
          _
        // Predicated region
        $region41: #{tpu_custom_call.1} parent=19 // pred_check
          %p453 = pneg %p211
        $region42: #{tpu_custom_call.1} parent=19 // pred_check_branch
          %455 = sbr.rel (%p453) target = $region44
        $region43: #{tpu_custom_call.1} parent=19 // pred_region
          %p456 = scmp.lt.s32.totalorder %s31, 1
          %s457 = scalar_select %p456, %s31, 1
          %s458 = scalar_lea.vmem %s6, %s457
        $region44: #{tpu_custom_call.1} parent=19 // pred_fallthru
          _
        // Predicated region
        $region45: #{tpu_custom_call.1} parent=19 // pred_check
          %p459 = pneg %p237
        $region46: #{tpu_custom_call.1} parent=19 // pred_check_branch
          %461 = sbr.rel (%p459) target = $region48
        $region47: #{tpu_custom_call.1} parent=19 // pred_region
          %p462 = scmp.lt.s32.totalorder %s31, 1
          %s463 = scalar_select %p462, %s31, 1
          %s464 = scalar_lea.vmem %s7, %s463
        $region48: #{tpu_custom_call.1} parent=19 // pred_fallthru
          _
        // Predicated region
        $region49: #{tpu_custom_call.1} parent=19 // pred_check
          %p465 = pneg %p263
        $region50: #{tpu_custom_call.1} parent=19 // pred_check_branch
          %467 = sbr.rel (%p465) target = $region52
        $region51: #{tpu_custom_call.1} parent=19 // pred_region
          %p468 = scmp.lt.s32.totalorder %s31, 1
          %s469 = scalar_select %p468, %s31, 1
          %s470 = smul.addr %s469, 4
          %s471 = smul.addr %s470, 8
          %s472 = scalar_lea.vmem %s8, %s471
        $region52: #{tpu_custom_call.1} parent=19 // pred_fallthru
          _
        // Predicated region
        $region53: #{tpu_custom_call.1} parent=19 // pred_check
          %p473 = pneg %p289
        $region54: #{tpu_custom_call.1} parent=19 // pred_check_branch
          %475 = sbr.rel (%p473) target = $region56
        $region55: #{tpu_custom_call.1} parent=19 // pred_region
          %p476 = scmp.lt.s32.totalorder %s31, 1
          %s477 = scalar_select %p476, %s31, 1
          %s478 = scalar_lea.vmem %s9, %s477
        $region56: #{tpu_custom_call.1} parent=19 // pred_fallthru
          _
        // Predicated region
        $region57: #{tpu_custom_call.1} parent=19 // pred_check
          %p479 = pneg %p315
        $region58: #{tpu_custom_call.1} parent=19 // pred_check_branch
          %481 = sbr.rel (%p479) target = $region60
        $region59: #{tpu_custom_call.1} parent=19 // pred_region
          %p482 = scmp.lt.s32.totalorder %s31, 1
          %s483 = scalar_select %p482, %s31, 1
          %s484 = smul.addr %s483, 8
          %s485 = smul.addr %s484, 8
          %s486 = scalar_lea.vmem %s10, %s485
        $region60: #{tpu_custom_call.1} parent=19 // pred_fallthru
          _
        // Predicated region
        $region61: #{tpu_custom_call.1} parent=19 // pred_check
          %p487 = pneg %p341
        $region62: #{tpu_custom_call.1} parent=19 // pred_check_branch
          %489 = sbr.rel (%p487) target = $region64
        $region63: #{tpu_custom_call.1} parent=19 // pred_region
          %p490 = scmp.lt.s32.totalorder %s31, 1
          %s491 = scalar_select %p490, %s31, 1
          %s492 = scalar_lea.vmem %s11, %s491
        $region64: #{tpu_custom_call.1} parent=19 // pred_fallthru
          _
      $region20: #{tpu_custom_call.1} parent=5 // pred_fallthru
        _
      %p493 = scmp.le.s32.totalorder 1, %s23
      %p494 = scmp.lt.s32.totalorder %s23, 3
      %p495 = pnand %p493, %p494
      %p496 = pneg %p495
      // Predicated region
      $region65: #{tpu_custom_call.1} parent=5 // pred_check
        _
      $region66: #{tpu_custom_call.1} parent=5 // pred_check_branch
        %498 = sbr.rel (%p495) target = $region68
      $region67: #{tpu_custom_call.1} parent=5 // pred_region
        %s499 = ssub.s32 %s23, 1
        // Predicated region
        $region69: #{tpu_custom_call.1} parent=67 // pred_check
          %p500 = pneg %p61
        $region70: #{tpu_custom_call.1} parent=67 // pred_check_branch
          %502 = sbr.rel (%p500) target = $region72
        $region71: #{tpu_custom_call.1} parent=67 // pred_region
          %503 = dma.done [#allocation4], 256
        $region72: #{tpu_custom_call.1} parent=67 // pred_fallthru
          _
        %s504 = sand.u32 %s74, 1
        %s505 = scalar_lea.sflag [#allocation7], %s504
        %s506 = sand.u32 %s74, 1
        %s507 = scalar_lea.vmem [#allocation6], %s506
        // Predicated region
        $region73: #{tpu_custom_call.1} parent=67 // pred_check
          %p508 = pneg %p87
        $region74: #{tpu_custom_call.1} parent=67 // pred_check_branch
          %510 = sbr.rel (%p508) target = $region76
        $region75: #{tpu_custom_call.1} parent=67 // pred_region
          %511 = dma.done %s505, 16
        $region76: #{tpu_custom_call.1} parent=67 // pred_fallthru
          _
        %p512 = pneg %p61
        %p513 = pneg %p58
        %s514 = sand.u32 %s74, 1
        %s515 = scalar_lea.sflag [#allocation7], %s514
        %s516 = sand.u32 %s74, 1
        %s517 = scalar_lea.vmem [#allocation6], %s516
        %p518 = pneg %p87
        %p519 = pneg %p84
        %p520 = scmp.lt.s32.totalorder %s33, 1
        %s521 = scalar_select %p520, %s33, 1
        %s522 = scalar_lea.vmem %s2, %s521
        %p523 = pneg %p113
        %p524 = pneg %p110
        %p525 = scmp.lt.s32.totalorder %s33, 1
        %s526 = scalar_select %p525, %s33, 1
        %s527 = smul.addr %s526, 4
        %s528 = smul.addr %s527, 8
        %s529 = scalar_lea.vmem %s3, %s528
        %p530 = pneg %p139
        %p531 = pneg %p136
        %p532 = scmp.lt.s32.totalorder %s33, 1
        %s533 = scalar_select %p532, %s33, 1
        %s534 = smul.addr %s533, 4
        %s535 = smul.addr %s534, 8
        %s536 = scalar_lea.vmem %s4, %s535
        %p537 = pneg %p165
        %p538 = pneg %p162
        %p539 = scmp.lt.s32.totalorder %s33, 1
        %s540 = scalar_select %p539, %s33, 1
        %s541 = scalar_lea.vmem %s5, %s540
        %p542 = pneg %p191
        %p543 = pneg %p188
        %p544 = scmp.lt.s32.totalorder %s33, 1
        %s545 = scalar_select %p544, %s33, 1
        %s546 = scalar_lea.vmem %s6, %s545
        %p547 = pneg %p217
        %p548 = pneg %p214
        %p549 = scmp.lt.s32.totalorder %s33, 1
        %s550 = scalar_select %p549, %s33, 1
        %s551 = scalar_lea.vmem %s7, %s550
        %p552 = pneg %p243
        %p553 = pneg %p240
        %p554 = scmp.lt.s32.totalorder %s33, 1
        %s555 = scalar_select %p554, %s33, 1
        %s556 = smul.addr %s555, 4
        %s557 = smul.addr %s556, 8
        %s558 = scalar_lea.vmem %s8, %s557
        %p559 = pneg %p269
        %p560 = pneg %p266
        %p561 = scmp.lt.s32.totalorder %s33, 1
        %s562 = scalar_select %p561, %s33, 1
        %s563 = scalar_lea.vmem %s9, %s562
        %p564 = pneg %p295
        %p565 = pneg %p292
        %p566 = scmp.lt.s32.totalorder %s33, 1
        %s567 = scalar_select %p566, %s33, 1
        %s568 = smul.addr %s567, 8
        %s569 = smul.addr %s568, 8
        %s570 = scalar_lea.vmem %s10, %s569
        %p571 = pneg %p321
        %p572 = pneg %p318
        %p573 = scmp.lt.s32.totalorder %s33, 1
        %s574 = scalar_select %p573, %s33, 1
        %s575 = scalar_lea.vmem %s11, %s574
        %p576 = pneg %p347
        %p577 = pneg %p344
        %p578 = pneg %p373
        %p579 = pneg %p370
        %s580 = smul.u32 2, %s32
        %p581 = scmp.lt.s32.totalorder %s33, 1
        %s582 = scalar_select %p581, %s33, 1
        %s583 = scalar_lea.vmem %s2, %s582
        %p584 = scmp.lt.s32.totalorder %s33, 1
        %s585 = scalar_select %p584, %s33, 1
        %s586 = smul.addr %s585, 4
        %s587 = smul.addr %s586, 8
        %s588 = scalar_lea.vmem %s3, %s587
        %p589 = scmp.lt.s32.totalorder %s33, 1
        %s590 = scalar_select %p589, %s33, 1
        %s591 = smul.addr %s590, 4
        %s592 = smul.addr %s591, 8
        %s593 = scalar_lea.vmem %s4, %s592
        %p594 = scmp.lt.s32.totalorder %s33, 1
        %s595 = scalar_select %p594, %s33, 1
        %s596 = scalar_lea.vmem %s5, %s595
        %p597 = scmp.lt.s32.totalorder %s33, 1
        %s598 = scalar_select %p597, %s33, 1
        %s599 = scalar_lea.vmem %s6, %s598
        %p600 = scmp.lt.s32.totalorder %s33, 1
        %s601 = scalar_select %p600, %s33, 1
        %s602 = scalar_lea.vmem %s7, %s601
        %p603 = scmp.lt.s32.totalorder %s33, 1
        %s604 = scalar_select %p603, %s33, 1
        %s605 = smul.addr %s604, 4
        %s606 = smul.addr %s605, 8
        %s607 = scalar_lea.vmem %s8, %s606
        %p608 = scmp.lt.s32.totalorder %s33, 1
        %s609 = scalar_select %p608, %s33, 1
        %s610 = scalar_lea.vmem %s9, %s609
        %p611 = scmp.lt.s32.totalorder %s33, 1
        %s612 = scalar_select %p611, %s33, 1
        %s613 = smul.addr %s612, 8
        %s614 = smul.addr %s613, 8
        %s615 = scalar_lea.vmem %s10, %s614
        %p616 = scmp.lt.s32.totalorder %s33, 1
        %s617 = scalar_select %p616, %s33, 1
        %s618 = scalar_lea.vmem %s11, %s617
        %s619 = smul.u32 2, %s32
        %p620 = scmp.eq.s32.totalorder %s33, 0
        // Predicated region
        $region77: #{tpu_custom_call.1} parent=67 // pred_check
          %p621 = pneg %p620
        $region78: #{tpu_custom_call.1} parent=67 // pred_check_branch
          %623 = sbr.rel (%p621) target = $region80
        $region79: #{tpu_custom_call.1} parent=67 // pred_region
          %v624 = vld [vmem:[#allocation3] sm:$0xff]
          %v625 = vld [vmem:[#allocation3 + $0x8] sm:$0xff]
          %vm626 = vcmask 261120
          %627 = vst.msk [vmem:[#allocation8] sm:$0xff] %vm626, %v624
          %628 = vst.msk [vmem:[#allocation8 + $0x8] sm:$0xff] %vm626, %v625
        $region80: #{tpu_custom_call.1} parent=67 // pred_fallthru
          _
        %v629 = vld [vmem:[#allocation8] sm:$0xff]
        %v630 = vld [vmem:[#allocation8 + $0x8] sm:$0xff]
        %v631 = vld [vmem:[%s507] sm:$0x1]
        %v632 = vld [vmem:[%s583] sm:$0x1]
        %vm633 = vcmask 261120
        %v634 = vsel %vm633, %v629, 0.0
        %635 = vadd.xlane.f32.xlu0 %v634
        %v636 = vpop.xlane.xlu0 %635
        %v637 = vsel %vm633, %v630, 0.0
        %638 = vadd.xlane.f32.xlu0 %v637
        %v639 = vpop.xlane.xlu0 %638
        %v640 = vrcp.pop 32.0
        %v641 = vmul.f32 %v636, %v640
        %v642 = vmul.f32 %v639, %v640
        %v643 = vsub.f32 %v629, %v641
        %v644 = vsub.f32 %v630, %v642
        %v645 = vmul.f32 %v643, %v643
        %v646 = vmul.f32 %v644, %v644
        %v647 = vsel %vm633, %v645, 0.0
        %648 = vadd.xlane.f32.xlu0 %v647
        %v649 = vpop.xlane.xlu0 %648
        %v650 = vsel %vm633, %v646, 0.0
        %651 = vadd.xlane.f32.xlu0 %v650
        %v652 = vpop.xlane.xlu0 %651
        %v653 = vmul.f32 %v649, %v640
        %v654 = vmul.f32 %v652, %v640
        %v655 = vadd.f32 %v653, 1e-05
        %v656 = vadd.f32 %v654, 1e-05
        %v657 = vrsqrt.pop %v655
        %v658 = vrsqrt.pop %v656
        %v659 = vmul.f32 %v643, %v657
        %v660 = vmul.f32 %v644, %v658
        %v662 = vlaneseq
        %v663 = vshrl.u32 %v662, 7
        %v664 = vsub.s32 0, %v663
        %v665 = vrot.slane %v631, %v664
        %v667 = vmul.f32 %v659, %v665
        %v668 = vmul.f32 %v660, %v665
        %v670 = vlaneseq
        %v671 = vshrl.u32 %v670, 7
        %v672 = vsub.s32 0, %v671
        %v673 = vrot.slane %v632, %v672
        %v675 = vadd.f32 %v667, %v673
        %v676 = vadd.f32 %v668, %v673
        %v677 = vld [vmem:[%s588] sm:$0xff]
        %v678 = vld [vmem:[%s588 + $0x8] sm:$0xff]
        %v679 = vld [vmem:[%s588 + $0x10] sm:$0xff]
        %v680 = vld [vmem:[%s588 + $0x18] sm:$0xff]
        %v682 = vsel %vm633, %v675, 0
        %v685 = vsel %vm633, %v676, 0
        %687 = vmatprep.subr.mxu0 0.0
        %688 = vmatpush1.msra.mxu0 0.0
        %689 = vmatprep.subr.mxu0 0.0
        %690 = vmatpush1.msra.mxu0 0.0
        %691 = vmatprep.subr.mxu0 0.0
        %692 = vmatpush1.msra.mxu0 0.0
        %693 = vmatprep.subr.mxu0 0.0
        %694 = vmatpush1.msra.mxu0 0.0
        %695 = vmatprep.subr.mxu0 0.0
        %696 = vmatpush1.msra.mxu0 0.0
        %697 = vmatprep.subr.mxu0 0.0
        %698 = vmatpush1.msra.mxu0 0.0
        %699 = vmatprep.subr.mxu0 0.0
        %700 = vmatpush1.msra.mxu0 0.0
        %701 = vmatprep.subr.mxu0 0.0
        %702 = vmatpush1.msra.mxu0 0.0
        %703 = vmatprep.subr.mxu0 0.0
        %704 = vmatpush1.msra.mxu0 0.0
        %705 = vmatprep.subr.mxu0 0.0
        %706 = vmatpush1.msra.mxu0 0.0
        %707 = vmatprep.subr.mxu0 0.0
        %708 = vmatpush1.msra.mxu0 0.0
        %709 = vmatprep.subr.mxu0 0.0
        %710 = vmatpush1.msra.mxu0 0.0
        %711 = vmatprep.subr.mxu0 0.0
        %712 = vmatpush1.msra.mxu0 %v680
        %713 = vmatprep.subr.mxu0 0.0
        %714 = vmatpush1.msra.mxu0 %v679
        %715 = vmatprep.subr.mxu0 0.0
        %716 = vmatpush1.msra.mxu0 %v678
        %717 = vmatprep.subr.mxu0 0.0
        %718 = vmatpush1.msra.mxu0 %v677
        %719 = vmatprep.subr.mxu0 0.0
        %720 = vmatpush2.msra.mxu0 0.0
        %721 = vmatprep.subr.mxu0 0.0
        %722 = vmatpush2.msra.mxu0 0.0
        %723 = vmatprep.subr.mxu0 0.0
        %724 = vmatpush2.msra.mxu0 0.0
        %725 = vmatprep.subr.mxu0 0.0
        %726 = vmatpush2.msra.mxu0 0.0
        %727 = vmatprep.subr.mxu0 0.0
        %728 = vmatpush2.msra.mxu0 0.0
        %729 = vmatprep.subr.mxu0 0.0
        %730 = vmatpush2.msra.mxu0 0.0
        %731 = vmatprep.subr.mxu0 0.0
        %732 = vmatpush2.msra.mxu0 0.0
        %733 = vmatprep.subr.mxu0 0.0
        %734 = vmatpush2.msra.mxu0 0.0
        %735 = vmatprep.subr.mxu0 0.0
        %736 = vmatpush2.msra.mxu0 0.0
        %737 = vmatprep.subr.mxu0 0.0
        %738 = vmatpush2.msra.mxu0 0.0
        %739 = vmatprep.subr.mxu0 0.0
        %740 = vmatpush2.msra.mxu0 0.0
        %741 = vmatprep.subr.mxu0 0.0
        %742 = vmatpush2.msra.mxu0 0.0
        %743 = vmatprep.subr.mxu0 0.0
        %744 = vmatpush2.msra.mxu0 0.0
        %745 = vmatprep.subr.mxu0 0.0
        %746 = vmatpush2.msra.mxu0 0.0
        %747 = vmatprep.subr.mxu0 0.0
        %748 = vmatpush2.msra.mxu0 0.0
        %749 = vmatprep.subr.mxu0 0.0
        %750 = vmatpush2.msra.mxu0 0.0
        %751 = vmatprep.mubr.f32.mxu0 0.0
        %752 = vmatmul.mubr.f32.gmra.mxu0 %v682
        %v753 = vpop.f32.mrf.mxu0
        %v754 = vadd.f32 0.0, %v753
        %v755 = vpop.f32.mrf.mxu0
        %756 = vmatprep.mubr.f32.mxu0 0.0
        %757 = vmatmul.mubr.f32.gmra.mxu0 %v685
        %v758 = vpop.f32.mrf.mxu0
        %v759 = vadd.f32 0.0, %v758
        %v760 = vpop.f32.mrf.mxu0
        %761 = vdwg.mxu0
        %763 = vrot.lane.b32.xlu0 %v754, 96
        %v764 = vpop.permute.xlu0 %763
        %vm765 = vcmask 64512
        %v766 = vsel %vm765, %v754, 0
        %v768 = vsel %vm765, %v764, 0
        %770 = vmatprep.subr.mxu0 0.0
        %771 = vmatpush1.xpose.msra.mxu0 0.0
        %772 = vmatprep.subr.mxu0 0.0
        %773 = vmatpush1.xpose.msra.mxu0 0.0
        %774 = vmatprep.subr.mxu0 0.0
        %775 = vmatpush1.xpose.msra.mxu0 0.0
        %776 = vmatprep.subr.mxu0 0.0
        %777 = vmatpush1.xpose.msra.mxu0 0.0
        %778 = vmatprep.subr.mxu0 0.0
        %779 = vmatpush1.xpose.msra.mxu0 0.0
        %780 = vmatprep.subr.mxu0 0.0
        %781 = vmatpush1.xpose.msra.mxu0 0.0
        %782 = vmatprep.subr.mxu0 0.0
        %783 = vmatpush1.xpose.msra.mxu0 0.0
        %784 = vmatprep.subr.mxu0 0.0
        %785 = vmatpush1.xpose.msra.mxu0 0.0
        %786 = vmatprep.subr.mxu0 0.0
        %787 = vmatpush1.xpose.msra.mxu0 0.0
        %788 = vmatprep.subr.mxu0 0.0
        %789 = vmatpush1.xpose.msra.mxu0 0.0
        %790 = vmatprep.subr.mxu0 0.0
        %791 = vmatpush1.xpose.msra.mxu0 0.0
        %792 = vmatprep.subr.mxu0 0.0
        %793 = vmatpush1.xpose.msra.mxu0 0.0
        %794 = vmatprep.subr.mxu0 0.0
        %795 = vmatpush1.xpose.msra.mxu0 0.0
        %796 = vmatprep.subr.mxu0 0.0
        %797 = vmatpush1.xpose.msra.mxu0 0.0
        %798 = vmatprep.subr.mxu0 0.0
        %799 = vmatpush1.xpose.msra.mxu0 0.0
        %800 = vmatprep.subr.mxu0 0.0
        %801 = vmatpush1.xpose.msra.mxu0 %v768
        %802 = vmatprep.subr.mxu0 0.0
        %803 = vmatpush2.xpose.msra.mxu0 0.0
        %804 = vmatprep.subr.mxu0 0.0
        %805 = vmatpush2.xpose.msra.mxu0 0.0
        %806 = vmatprep.subr.mxu0 0.0
        %807 = vmatpush2.xpose.msra.mxu0 0.0
        %808 = vmatprep.subr.mxu0 0.0
        %809 = vmatpush2.xpose.msra.mxu0 0.0
        %810 = vmatprep.subr.mxu0 0.0
        %811 = vmatpush2.xpose.msra.mxu0 0.0
        %812 = vmatprep.subr.mxu0 0.0
        %813 = vmatpush2.xpose.msra.mxu0 0.0
        %814 = vmatprep.subr.mxu0 0.0
        %815 = vmatpush2.xpose.msra.mxu0 0.0
        %816 = vmatprep.subr.mxu0 0.0
        %817 = vmatpush2.xpose.msra.mxu0 0.0
        %818 = vmatprep.subr.mxu0 0.0
        %819 = vmatpush2.xpose.msra.mxu0 0.0
        %820 = vmatprep.subr.mxu0 0.0
        %821 = vmatpush2.xpose.msra.mxu0 0.0
        %822 = vmatprep.subr.mxu0 0.0
        %823 = vmatpush2.xpose.msra.mxu0 0.0
        %824 = vmatprep.subr.mxu0 0.0
        %825 = vmatpush2.xpose.msra.mxu0 0.0
        %826 = vmatprep.subr.mxu0 0.0
        %827 = vmatpush2.xpose.msra.mxu0 0.0
        %828 = vmatprep.subr.mxu0 0.0
        %829 = vmatpush2.xpose.msra.mxu0 0.0
        %830 = vmatprep.subr.mxu0 0.0
        %831 = vmatpush2.xpose.msra.mxu0 0.0
        %832 = vmatprep.subr.mxu0 0.0
        %833 = vmatpush2.xpose.msra.mxu0 0.0
        %834 = vmatprep.mubr.f32.mxu0 0.0
        %835 = vmatmul.mubr.f32.gmra.mxu0 %v766
        %v836 = vpop.f32.mrf.mxu0
        %v837 = vadd.f32 0.0, %v836
        %v838 = vpop.f32.mrf.mxu0
        %839 = vdwg.mxu0
        %841 = vrot.lane.b32.xlu0 %v759, 96
        %v842 = vpop.permute.xlu0 %841
        %v843 = vsel %vm765, %v759, 0
        %v845 = vsel %vm765, %v842, 0
        %847 = vmatprep.subr.mxu0 0.0
        %848 = vmatpush1.xpose.msra.mxu0 0.0
        %849 = vmatprep.subr.mxu0 0.0
        %850 = vmatpush1.xpose.msra.mxu0 0.0
        %851 = vmatprep.subr.mxu0 0.0
        %852 = vmatpush1.xpose.msra.mxu0 0.0
        %853 = vmatprep.subr.mxu0 0.0
        %854 = vmatpush1.xpose.msra.mxu0 0.0
        %855 = vmatprep.subr.mxu0 0.0
        %856 = vmatpush1.xpose.msra.mxu0 0.0
        %857 = vmatprep.subr.mxu0 0.0
        %858 = vmatpush1.xpose.msra.mxu0 0.0
        %859 = vmatprep.subr.mxu0 0.0
        %860 = vmatpush1.xpose.msra.mxu0 0.0
        %861 = vmatprep.subr.mxu0 0.0
        %862 = vmatpush1.xpose.msra.mxu0 0.0
        %863 = vmatprep.subr.mxu0 0.0
        %864 = vmatpush1.xpose.msra.mxu0 0.0
        %865 = vmatprep.subr.mxu0 0.0
        %866 = vmatpush1.xpose.msra.mxu0 0.0
        %867 = vmatprep.subr.mxu0 0.0
        %868 = vmatpush1.xpose.msra.mxu0 0.0
        %869 = vmatprep.subr.mxu0 0.0
        %870 = vmatpush1.xpose.msra.mxu0 0.0
        %871 = vmatprep.subr.mxu0 0.0
        %872 = vmatpush1.xpose.msra.mxu0 0.0
        %873 = vmatprep.subr.mxu0 0.0
        %874 = vmatpush1.xpose.msra.mxu0 0.0
        %875 = vmatprep.subr.mxu0 0.0
        %876 = vmatpush1.xpose.msra.mxu0 0.0
        %877 = vmatprep.subr.mxu0 0.0
        %878 = vmatpush1.xpose.msra.mxu0 %v845
        %879 = vmatprep.subr.mxu0 0.0
        %880 = vmatpush2.xpose.msra.mxu0 0.0
        %881 = vmatprep.subr.mxu0 0.0
        %882 = vmatpush2.xpose.msra.mxu0 0.0
        %883 = vmatprep.subr.mxu0 0.0
        %884 = vmatpush2.xpose.msra.mxu0 0.0
        %885 = vmatprep.subr.mxu0 0.0
        %886 = vmatpush2.xpose.msra.mxu0 0.0
        %887 = vmatprep.subr.mxu0 0.0
        %888 = vmatpush2.xpose.msra.mxu0 0.0
        %889 = vmatprep.subr.mxu0 0.0
        %890 = vmatpush2.xpose.msra.mxu0 0.0
        %891 = vmatprep.subr.mxu0 0.0
        %892 = vmatpush2.xpose.msra.mxu0 0.0
        %893 = vmatprep.subr.mxu0 0.0
        %894 = vmatpush2.xpose.msra.mxu0 0.0
        %895 = vmatprep.subr.mxu0 0.0
        %896 = vmatpush2.xpose.msra.mxu0 0.0
        %897 = vmatprep.subr.mxu0 0.0
        %898 = vmatpush2.xpose.msra.mxu0 0.0
        %899 = vmatprep.subr.mxu0 0.0
        %900 = vmatpush2.xpose.msra.mxu0 0.0
        %901 = vmatprep.subr.mxu0 0.0
        %902 = vmatpush2.xpose.msra.mxu0 0.0
        %903 = vmatprep.subr.mxu0 0.0
        %904 = vmatpush2.xpose.msra.mxu0 0.0
        %905 = vmatprep.subr.mxu0 0.0
        %906 = vmatpush2.xpose.msra.mxu0 0.0
        %907 = vmatprep.subr.mxu0 0.0
        %908 = vmatpush2.xpose.msra.mxu0 0.0
        %909 = vmatprep.subr.mxu0 0.0
        %910 = vmatpush2.xpose.msra.mxu0 0.0
        %911 = vmatprep.mubr.f32.mxu0 0.0
        %912 = vmatmul.mubr.f32.gmra.mxu0 %v843
        %v913 = vpop.f32.mrf.mxu0
        %v914 = vadd.f32 0.0, %v913
        %v915 = vpop.f32.mrf.mxu0
        %916 = vdwg.mxu0
        %v917 = vsel %vm765, %v837, -inf
        %918 = vmax.xlane.f32.xlu0 %v917
        %v919 = vpop.xlane.xlu0 %918
        %v920 = vsel %vm765, %v914, -inf
        %921 = vmax.xlane.f32.xlu0 %v920
        %v922 = vpop.xlane.xlu0 %921
        %v923 = vsub.f32 %v837, %v919
        %v924 = vsub.f32 %v914, %v922
        %v925 = vmul.f32 %v923, 1.442695
        %v926 = vpow.pop %v925
        %v927 = vmul.f32 %v924, 1.442695
        %v928 = vpow.pop %v927
        %v929 = vsel %vm765, %v926, 0.0
        %930 = vadd.xlane.f32.xlu0 %v929
        %v931 = vpop.xlane.xlu0 %930
        %v932 = vsel %vm765, %v928, 0.0
        %933 = vadd.xlane.f32.xlu0 %v932
        %v934 = vpop.xlane.xlu0 %933
        %v935 = vrcp.pop %v931
        %v936 = vrcp.pop %v934
        %v937 = vmul.f32 %v926, %v935
        %v938 = vmul.f32 %v928, %v936
        %939 = vrot.lane.b32.xlu0 %v754, 64
        %v940 = vpop.permute.xlu0 %939
        %v943 = vsel %vm765, %v937, 0
        %945 = vmatprep.subr.mxu0 0.0
        %946 = vmatpush1.msra.mxu0 0.0
        %947 = vmatprep.subr.mxu0 0.0
        %948 = vmatpush1.msra.mxu0 0.0
        %949 = vmatprep.subr.mxu0 0.0
        %950 = vmatpush1.msra.mxu0 0.0
        %951 = vmatprep.subr.mxu0 0.0
        %952 = vmatpush1.msra.mxu0 0.0
        %953 = vmatprep.subr.mxu0 0.0
        %954 = vmatpush1.msra.mxu0 0.0
        %955 = vmatprep.subr.mxu0 0.0
        %956 = vmatpush1.msra.mxu0 0.0
        %957 = vmatprep.subr.mxu0 0.0
        %958 = vmatpush1.msra.mxu0 0.0
        %959 = vmatprep.subr.mxu0 0.0
        %960 = vmatpush1.msra.mxu0 0.0
        %961 = vmatprep.subr.mxu0 0.0
        %962 = vmatpush1.msra.mxu0 0.0
        %963 = vmatprep.subr.mxu0 0.0
        %964 = vmatpush1.msra.mxu0 0.0
        %965 = vmatprep.subr.mxu0 0.0
        %966 = vmatpush1.msra.mxu0 0.0
        %967 = vmatprep.subr.mxu0 0.0
        %968 = vmatpush1.msra.mxu0 0.0
        %969 = vmatprep.subr.mxu0 0.0
        %970 = vmatpush1.msra.mxu0 0.0
        %971 = vmatprep.subr.mxu0 0.0
        %972 = vmatpush1.msra.mxu0 0.0
        %973 = vmatprep.subr.mxu0 0.0
        %974 = vmatpush1.msra.mxu0 0.0
        %975 = vmatprep.subr.mxu0 0.0
        %976 = vmatpush1.msra.mxu0 %v940
        %977 = vmatprep.subr.mxu0 0.0
        %978 = vmatpush2.msra.mxu0 0.0
        %979 = vmatprep.subr.mxu0 0.0
        %980 = vmatpush2.msra.mxu0 0.0
        %981 = vmatprep.subr.mxu0 0.0
        %982 = vmatpush2.msra.mxu0 0.0
        %983 = vmatprep.subr.mxu0 0.0
        %984 = vmatpush2.msra.mxu0 0.0
        %985 = vmatprep.subr.mxu0 0.0
        %986 = vmatpush2.msra.mxu0 0.0
        %987 = vmatprep.subr.mxu0 0.0
        %988 = vmatpush2.msra.mxu0 0.0
        %989 = vmatprep.subr.mxu0 0.0
        %990 = vmatpush2.msra.mxu0 0.0
        %991 = vmatprep.subr.mxu0 0.0
        %992 = vmatpush2.msra.mxu0 0.0
        %993 = vmatprep.subr.mxu0 0.0
        %994 = vmatpush2.msra.mxu0 0.0
        %995 = vmatprep.subr.mxu0 0.0
        %996 = vmatpush2.msra.mxu0 0.0
        %997 = vmatprep.subr.mxu0 0.0
        %998 = vmatpush2.msra.mxu0 0.0
        %999 = vmatprep.subr.mxu0 0.0
        %1000 = vmatpush2.msra.mxu0 0.0
        %1001 = vmatprep.subr.mxu0 0.0
        %1002 = vmatpush2.msra.mxu0 0.0
        %1003 = vmatprep.subr.mxu0 0.0
        %1004 = vmatpush2.msra.mxu0 0.0
        %1005 = vmatprep.subr.mxu0 0.0
        %1006 = vmatpush2.msra.mxu0 0.0
        %1007 = vmatprep.subr.mxu0 0.0
        %1008 = vmatpush2.msra.mxu0 0.0
        %1009 = vmatprep.mubr.f32.mxu0 0.0
        %1010 = vmatmul.mubr.f32.gmra.mxu0 %v943
        %v1011 = vpop.f32.mrf.mxu0
        %v1012 = vadd.f32 0.0, %v1011
        %v1013 = vpop.f32.mrf.mxu0
        %1014 = vdwg.mxu0
        %1015 = vrot.lane.b32.xlu0 %v759, 64
        %v1016 = vpop.permute.xlu0 %1015
        %v1019 = vsel %vm765, %v938, 0
        %1021 = vmatprep.subr.mxu0 0.0
        %1022 = vmatpush1.msra.mxu0 0.0
        %1023 = vmatprep.subr.mxu0 0.0
        %1024 = vmatpush1.msra.mxu0 0.0
        %1025 = vmatprep.subr.mxu0 0.0
        %1026 = vmatpush1.msra.mxu0 0.0
        %1027 = vmatprep.subr.mxu0 0.0
        %1028 = vmatpush1.msra.mxu0 0.0
        %1029 = vmatprep.subr.mxu0 0.0
        %1030 = vmatpush1.msra.mxu0 0.0
        %1031 = vmatprep.subr.mxu0 0.0
        %1032 = vmatpush1.msra.mxu0 0.0
        %1033 = vmatprep.subr.mxu0 0.0
        %1034 = vmatpush1.msra.mxu0 0.0
        %1035 = vmatprep.subr.mxu0 0.0
        %1036 = vmatpush1.msra.mxu0 0.0
        %1037 = vmatprep.subr.mxu0 0.0
        %1038 = vmatpush1.msra.mxu0 0.0
        %1039 = vmatprep.subr.mxu0 0.0
        %1040 = vmatpush1.msra.mxu0 0.0
        %1041 = vmatprep.subr.mxu0 0.0
        %1042 = vmatpush1.msra.mxu0 0.0
        %1043 = vmatprep.subr.mxu0 0.0
        %1044 = vmatpush1.msra.mxu0 0.0
        %1045 = vmatprep.subr.mxu0 0.0
        %1046 = vmatpush1.msra.mxu0 0.0
        %1047 = vmatprep.subr.mxu0 0.0
        %1048 = vmatpush1.msra.mxu0 0.0
        %1049 = vmatprep.subr.mxu0 0.0
        %1050 = vmatpush1.msra.mxu0 0.0
        %1051 = vmatprep.subr.mxu0 0.0
        %1052 = vmatpush1.msra.mxu0 %v1016
        %1053 = vmatprep.subr.mxu0 0.0
        %1054 = vmatpush2.msra.mxu0 0.0
        %1055 = vmatprep.subr.mxu0 0.0
        %1056 = vmatpush2.msra.mxu0 0.0
        %1057 = vmatprep.subr.mxu0 0.0
        %1058 = vmatpush2.msra.mxu0 0.0
        %1059 = vmatprep.subr.mxu0 0.0
        %1060 = vmatpush2.msra.mxu0 0.0
        %1061 = vmatprep.subr.mxu0 0.0
        %1062 = vmatpush2.msra.mxu0 0.0
        %1063 = vmatprep.subr.mxu0 0.0
        %1064 = vmatpush2.msra.mxu0 0.0
        %1065 = vmatprep.subr.mxu0 0.0
        %1066 = vmatpush2.msra.mxu0 0.0
        %1067 = vmatprep.subr.mxu0 0.0
        %1068 = vmatpush2.msra.mxu0 0.0
        %1069 = vmatprep.subr.mxu0 0.0
        %1070 = vmatpush2.msra.mxu0 0.0
        %1071 = vmatprep.subr.mxu0 0.0
        %1072 = vmatpush2.msra.mxu0 0.0
        %1073 = vmatprep.subr.mxu0 0.0
        %1074 = vmatpush2.msra.mxu0 0.0
        %1075 = vmatprep.subr.mxu0 0.0
        %1076 = vmatpush2.msra.mxu0 0.0
        %1077 = vmatprep.subr.mxu0 0.0
        %1078 = vmatpush2.msra.mxu0 0.0
        %1079 = vmatprep.subr.mxu0 0.0
        %1080 = vmatpush2.msra.mxu0 0.0
        %1081 = vmatprep.subr.mxu0 0.0
        %1082 = vmatpush2.msra.mxu0 0.0
        %1083 = vmatprep.subr.mxu0 0.0
        %1084 = vmatpush2.msra.mxu0 0.0
        %1085 = vmatprep.mubr.f32.mxu0 0.0
        %1086 = vmatmul.mubr.f32.gmra.mxu0 %v1019
        %v1087 = vpop.f32.mrf.mxu0
        %v1088 = vadd.f32 0.0, %v1087
        %v1089 = vpop.f32.mrf.mxu0
        %1090 = vdwg.mxu0
        %1091 = vst.msk [vmem:[#allocation2] sm:$0xff] %vm765, %v1012
        %1092 = vst.msk [vmem:[#allocation2 + $0x8] sm:$0xff] %vm765, %v1088
        %1093 = vrot.lane.b32.xlu0 %v754, 120
        %v1094 = vpop.permute.xlu0 %1093
        %1095 = vrot.lane.b32.xlu0 %v754, 88
        %v1096 = vpop.permute.xlu0 %1095
        %v1097 = vsel %vm765, %v1094, 0
        %v1099 = vsel %vm765, %v1096, 0
        %1101 = vmatprep.subr.mxu0 0.0
        %1102 = vmatpush1.xpose.msra.mxu0 0.0
        %1103 = vmatprep.subr.mxu0 0.0
        %1104 = vmatpush1.xpose.msra.mxu0 0.0
        %1105 = vmatprep.subr.mxu0 0.0
        %1106 = vmatpush1.xpose.msra.mxu0 0.0
        %1107 = vmatprep.subr.mxu0 0.0
        %1108 = vmatpush1.xpose.msra.mxu0 0.0
        %1109 = vmatprep.subr.mxu0 0.0
        %1110 = vmatpush1.xpose.msra.mxu0 0.0
        %1111 = vmatprep.subr.mxu0 0.0
        %1112 = vmatpush1.xpose.msra.mxu0 0.0
        %1113 = vmatprep.subr.mxu0 0.0
        %1114 = vmatpush1.xpose.msra.mxu0 0.0
        %1115 = vmatprep.subr.mxu0 0.0
        %1116 = vmatpush1.xpose.msra.mxu0 0.0
        %1117 = vmatprep.subr.mxu0 0.0
        %1118 = vmatpush1.xpose.msra.mxu0 0.0
        %1119 = vmatprep.subr.mxu0 0.0
        %1120 = vmatpush1.xpose.msra.mxu0 0.0
        %1121 = vmatprep.subr.mxu0 0.0
        %1122 = vmatpush1.xpose.msra.mxu0 0.0
        %1123 = vmatprep.subr.mxu0 0.0
        %1124 = vmatpush1.xpose.msra.mxu0 0.0
        %1125 = vmatprep.subr.mxu0 0.0
        %1126 = vmatpush1.xpose.msra.mxu0 0.0
        %1127 = vmatprep.subr.mxu0 0.0
        %1128 = vmatpush1.xpose.msra.mxu0 0.0
        %1129 = vmatprep.subr.mxu0 0.0
        %1130 = vmatpush1.xpose.msra.mxu0 0.0
        %1131 = vmatprep.subr.mxu0 0.0
        %1132 = vmatpush1.xpose.msra.mxu0 %v1099
        %1133 = vmatprep.subr.mxu0 0.0
        %1134 = vmatpush2.xpose.msra.mxu0 0.0
        %1135 = vmatprep.subr.mxu0 0.0
        %1136 = vmatpush2.xpose.msra.mxu0 0.0
        %1137 = vmatprep.subr.mxu0 0.0
        %1138 = vmatpush2.xpose.msra.mxu0 0.0
        %1139 = vmatprep.subr.mxu0 0.0
        %1140 = vmatpush2.xpose.msra.mxu0 0.0
        %1141 = vmatprep.subr.mxu0 0.0
        %1142 = vmatpush2.xpose.msra.mxu0 0.0
        %1143 = vmatprep.subr.mxu0 0.0
        %1144 = vmatpush2.xpose.msra.mxu0 0.0
        %1145 = vmatprep.subr.mxu0 0.0
        %1146 = vmatpush2.xpose.msra.mxu0 0.0
        %1147 = vmatprep.subr.mxu0 0.0
        %1148 = vmatpush2.xpose.msra.mxu0 0.0
        %1149 = vmatprep.subr.mxu0 0.0
        %1150 = vmatpush2.xpose.msra.mxu0 0.0
        %1151 = vmatprep.subr.mxu0 0.0
        %1152 = vmatpush2.xpose.msra.mxu0 0.0
        %1153 = vmatprep.subr.mxu0 0.0
        %1154 = vmatpush2.xpose.msra.mxu0 0.0
        %1155 = vmatprep.subr.mxu0 0.0
        %1156 = vmatpush2.xpose.msra.mxu0 0.0
        %1157 = vmatprep.subr.mxu0 0.0
        %1158 = vmatpush2.xpose.msra.mxu0 0.0
        %1159 = vmatprep.subr.mxu0 0.0
        %1160 = vmatpush2.xpose.msra.mxu0 0.0
        %1161 = vmatprep.subr.mxu0 0.0
        %1162 = vmatpush2.xpose.msra.mxu0 0.0
        %1163 = vmatprep.subr.mxu0 0.0
        %1164 = vmatpush2.xpose.msra.mxu0 0.0
        %1165 = vmatprep.mubr.f32.mxu0 0.0
        %1166 = vmatmul.mubr.f32.gmra.mxu0 %v1097
        %v1167 = vpop.f32.mrf.mxu0
        %v1168 = vadd.f32 0.0, %v1167
        %v1169 = vpop.f32.mrf.mxu0
        %1170 = vdwg.mxu0
        %1171 = vrot.lane.b32.xlu0 %v759, 120
        %v1172 = vpop.permute.xlu0 %1171
        %1173 = vrot.lane.b32.xlu0 %v759, 88
        %v1174 = vpop.permute.xlu0 %1173
        %v1175 = vsel %vm765, %v1172, 0
        %v1177 = vsel %vm765, %v1174, 0
        %1179 = vmatprep.subr.mxu0 0.0
        %1180 = vmatpush1.xpose.msra.mxu0 0.0
        %1181 = vmatprep.subr.mxu0 0.0
        %1182 = vmatpush1.xpose.msra.mxu0 0.0
        %1183 = vmatprep.subr.mxu0 0.0
        %1184 = vmatpush1.xpose.msra.mxu0 0.0
        %1185 = vmatprep.subr.mxu0 0.0
        %1186 = vmatpush1.xpose.msra.mxu0 0.0
        %1187 = vmatprep.subr.mxu0 0.0
        %1188 = vmatpush1.xpose.msra.mxu0 0.0
        %1189 = vmatprep.subr.mxu0 0.0
        %1190 = vmatpush1.xpose.msra.mxu0 0.0
        %1191 = vmatprep.subr.mxu0 0.0
        %1192 = vmatpush1.xpose.msra.mxu0 0.0
        %1193 = vmatprep.subr.mxu0 0.0
        %1194 = vmatpush1.xpose.msra.mxu0 0.0
        %1195 = vmatprep.subr.mxu0 0.0
        %1196 = vmatpush1.xpose.msra.mxu0 0.0
        %1197 = vmatprep.subr.mxu0 0.0
        %1198 = vmatpush1.xpose.msra.mxu0 0.0
        %1199 = vmatprep.subr.mxu0 0.0
        %1200 = vmatpush1.xpose.msra.mxu0 0.0
        %1201 = vmatprep.subr.mxu0 0.0
        %1202 = vmatpush1.xpose.msra.mxu0 0.0
        %1203 = vmatprep.subr.mxu0 0.0
        %1204 = vmatpush1.xpose.msra.mxu0 0.0
        %1205 = vmatprep.subr.mxu0 0.0
        %1206 = vmatpush1.xpose.msra.mxu0 0.0
        %1207 = vmatprep.subr.mxu0 0.0
        %1208 = vmatpush1.xpose.msra.mxu0 0.0
        %1209 = vmatprep.subr.mxu0 0.0
        %1210 = vmatpush1.xpose.msra.mxu0 %v1177
        %1211 = vmatprep.subr.mxu0 0.0
        %1212 = vmatpush2.xpose.msra.mxu0 0.0
        %1213 = vmatprep.subr.mxu0 0.0
        %1214 = vmatpush2.xpose.msra.mxu0 0.0
        %1215 = vmatprep.subr.mxu0 0.0
        %1216 = vmatpush2.xpose.msra.mxu0 0.0
        %1217 = vmatprep.subr.mxu0 0.0
        %1218 = vmatpush2.xpose.msra.mxu0 0.0
        %1219 = vmatprep.subr.mxu0 0.0
        %1220 = vmatpush2.xpose.msra.mxu0 0.0
        %1221 = vmatprep.subr.mxu0 0.0
        %1222 = vmatpush2.xpose.msra.mxu0 0.0
        %1223 = vmatprep.subr.mxu0 0.0
        %1224 = vmatpush2.xpose.msra.mxu0 0.0
        %1225 = vmatprep.subr.mxu0 0.0
        %1226 = vmatpush2.xpose.msra.mxu0 0.0
        %1227 = vmatprep.subr.mxu0 0.0
        %1228 = vmatpush2.xpose.msra.mxu0 0.0
        %1229 = vmatprep.subr.mxu0 0.0
        %1230 = vmatpush2.xpose.msra.mxu0 0.0
        %1231 = vmatprep.subr.mxu0 0.0
        %1232 = vmatpush2.xpose.msra.mxu0 0.0
        %1233 = vmatprep.subr.mxu0 0.0
        %1234 = vmatpush2.xpose.msra.mxu0 0.0
        %1235 = vmatprep.subr.mxu0 0.0
        %1236 = vmatpush2.xpose.msra.mxu0 0.0
        %1237 = vmatprep.subr.mxu0 0.0
        %1238 = vmatpush2.xpose.msra.mxu0 0.0
        %1239 = vmatprep.subr.mxu0 0.0
        %1240 = vmatpush2.xpose.msra.mxu0 0.0
        %1241 = vmatprep.subr.mxu0 0.0
        %1242 = vmatpush2.xpose.msra.mxu0 0.0
        %1243 = vmatprep.mubr.f32.mxu0 0.0
        %1244 = vmatmul.mubr.f32.gmra.mxu0 %v1175
        %v1245 = vpop.f32.mrf.mxu0
        %v1246 = vadd.f32 0.0, %v1245
        %v1247 = vpop.f32.mrf.mxu0
        %1248 = vdwg.mxu0
        %v1249 = vsel %vm765, %v1168, -inf
        %1250 = vmax.xlane.f32.xlu0 %v1249
        %v1251 = vpop.xlane.xlu0 %1250
        %v1252 = vsel %vm765, %v1246, -inf
        %1253 = vmax.xlane.f32.xlu0 %v1252
        %v1254 = vpop.xlane.xlu0 %1253
        %v1255 = vsub.f32 %v1168, %v1251
        %v1256 = vsub.f32 %v1246, %v1254
        %v1257 = vmul.f32 %v1255, 1.442695
        %v1258 = vpow.pop %v1257
        %v1259 = vmul.f32 %v1256, 1.442695
        %v1260 = vpow.pop %v1259
        %v1261 = vsel %vm765, %v1258, 0.0
        %1262 = vadd.xlane.f32.xlu0 %v1261
        %v1263 = vpop.xlane.xlu0 %1262
        %v1264 = vsel %vm765, %v1260, 0.0
        %1265 = vadd.xlane.f32.xlu0 %v1264
        %v1266 = vpop.xlane.xlu0 %1265
        %v1267 = vrcp.pop %v1263
        %v1268 = vrcp.pop %v1266
        %v1269 = vmul.f32 %v1258, %v1267
        %v1270 = vmul.f32 %v1260, %v1268
        %1271 = vrot.lane.b32.xlu0 %v754, 56
        %v1272 = vpop.permute.xlu0 %1271
        %v1275 = vsel %vm765, %v1269, 0
        %1277 = vmatprep.subr.mxu0 0.0
        %1278 = vmatpush1.msra.mxu0 0.0
        %1279 = vmatprep.subr.mxu0 0.0
        %1280 = vmatpush1.msra.mxu0 0.0
        %1281 = vmatprep.subr.mxu0 0.0
        %1282 = vmatpush1.msra.mxu0 0.0
        %1283 = vmatprep.subr.mxu0 0.0
        %1284 = vmatpush1.msra.mxu0 0.0
        %1285 = vmatprep.subr.mxu0 0.0
        %1286 = vmatpush1.msra.mxu0 0.0
        %1287 = vmatprep.subr.mxu0 0.0
        %1288 = vmatpush1.msra.mxu0 0.0
        %1289 = vmatprep.subr.mxu0 0.0
        %1290 = vmatpush1.msra.mxu0 0.0
        %1291 = vmatprep.subr.mxu0 0.0
        %1292 = vmatpush1.msra.mxu0 0.0
        %1293 = vmatprep.subr.mxu0 0.0
        %1294 = vmatpush1.msra.mxu0 0.0
        %1295 = vmatprep.subr.mxu0 0.0
        %1296 = vmatpush1.msra.mxu0 0.0
        %1297 = vmatprep.subr.mxu0 0.0
        %1298 = vmatpush1.msra.mxu0 0.0
        %1299 = vmatprep.subr.mxu0 0.0
        %1300 = vmatpush1.msra.mxu0 0.0
        %1301 = vmatprep.subr.mxu0 0.0
        %1302 = vmatpush1.msra.mxu0 0.0
        %1303 = vmatprep.subr.mxu0 0.0
        %1304 = vmatpush1.msra.mxu0 0.0
        %1305 = vmatprep.subr.mxu0 0.0
        %1306 = vmatpush1.msra.mxu0 0.0
        %1307 = vmatprep.subr.mxu0 0.0
        %1308 = vmatpush1.msra.mxu0 %v1272
        %1309 = vmatprep.subr.mxu0 0.0
        %1310 = vmatpush2.msra.mxu0 0.0
        %1311 = vmatprep.subr.mxu0 0.0
        %1312 = vmatpush2.msra.mxu0 0.0
        %1313 = vmatprep.subr.mxu0 0.0
        %1314 = vmatpush2.msra.mxu0 0.0
        %1315 = vmatprep.subr.mxu0 0.0
        %1316 = vmatpush2.msra.mxu0 0.0
        %1317 = vmatprep.subr.mxu0 0.0
        %1318 = vmatpush2.msra.mxu0 0.0
        %1319 = vmatprep.subr.mxu0 0.0
        %1320 = vmatpush2.msra.mxu0 0.0
        %1321 = vmatprep.subr.mxu0 0.0
        %1322 = vmatpush2.msra.mxu0 0.0
        %1323 = vmatprep.subr.mxu0 0.0
        %1324 = vmatpush2.msra.mxu0 0.0
        %1325 = vmatprep.subr.mxu0 0.0
        %1326 = vmatpush2.msra.mxu0 0.0
        %1327 = vmatprep.subr.mxu0 0.0
        %1328 = vmatpush2.msra.mxu0 0.0
        %1329 = vmatprep.subr.mxu0 0.0
        %1330 = vmatpush2.msra.mxu0 0.0
        %1331 = vmatprep.subr.mxu0 0.0
        %1332 = vmatpush2.msra.mxu0 0.0
        %1333 = vmatprep.subr.mxu0 0.0
        %1334 = vmatpush2.msra.mxu0 0.0
        %1335 = vmatprep.subr.mxu0 0.0
        %1336 = vmatpush2.msra.mxu0 0.0
        %1337 = vmatprep.subr.mxu0 0.0
        %1338 = vmatpush2.msra.mxu0 0.0
        %1339 = vmatprep.subr.mxu0 0.0
        %1340 = vmatpush2.msra.mxu0 0.0
        %1341 = vmatprep.mubr.f32.mxu0 0.0
        %1342 = vmatmul.mubr.f32.gmra.mxu0 %v1275
        %v1343 = vpop.f32.mrf.mxu0
        %v1344 = vadd.f32 0.0, %v1343
        %v1345 = vpop.f32.mrf.mxu0
        %1346 = vdwg.mxu0
        %1347 = vrot.lane.b32.xlu0 %v759, 56
        %v1348 = vpop.permute.xlu0 %1347
        %v1351 = vsel %vm765, %v1270, 0
        %1353 = vmatprep.subr.mxu0 0.0
        %1354 = vmatpush1.msra.mxu0 0.0
        %1355 = vmatprep.subr.mxu0 0.0
        %1356 = vmatpush1.msra.mxu0 0.0
        %1357 = vmatprep.subr.mxu0 0.0
        %1358 = vmatpush1.msra.mxu0 0.0
        %1359 = vmatprep.subr.mxu0 0.0
        %1360 = vmatpush1.msra.mxu0 0.0
        %1361 = vmatprep.subr.mxu0 0.0
        %1362 = vmatpush1.msra.mxu0 0.0
        %1363 = vmatprep.subr.mxu0 0.0
        %1364 = vmatpush1.msra.mxu0 0.0
        %1365 = vmatprep.subr.mxu0 0.0
        %1366 = vmatpush1.msra.mxu0 0.0
        %1367 = vmatprep.subr.mxu0 0.0
        %1368 = vmatpush1.msra.mxu0 0.0
        %1369 = vmatprep.subr.mxu0 0.0
        %1370 = vmatpush1.msra.mxu0 0.0
        %1371 = vmatprep.subr.mxu0 0.0
        %1372 = vmatpush1.msra.mxu0 0.0
        %1373 = vmatprep.subr.mxu0 0.0
        %1374 = vmatpush1.msra.mxu0 0.0
        %1375 = vmatprep.subr.mxu0 0.0
        %1376 = vmatpush1.msra.mxu0 0.0
        %1377 = vmatprep.subr.mxu0 0.0
        %1378 = vmatpush1.msra.mxu0 0.0
        %1379 = vmatprep.subr.mxu0 0.0
        %1380 = vmatpush1.msra.mxu0 0.0
        %1381 = vmatprep.subr.mxu0 0.0
        %1382 = vmatpush1.msra.mxu0 0.0
        %1383 = vmatprep.subr.mxu0 0.0
        %1384 = vmatpush1.msra.mxu0 %v1348
        %1385 = vmatprep.subr.mxu0 0.0
        %1386 = vmatpush2.msra.mxu0 0.0
        %1387 = vmatprep.subr.mxu0 0.0
        %1388 = vmatpush2.msra.mxu0 0.0
        %1389 = vmatprep.subr.mxu0 0.0
        %1390 = vmatpush2.msra.mxu0 0.0
        %1391 = vmatprep.subr.mxu0 0.0
        %1392 = vmatpush2.msra.mxu0 0.0
        %1393 = vmatprep.subr.mxu0 0.0
        %1394 = vmatpush2.msra.mxu0 0.0
        %1395 = vmatprep.subr.mxu0 0.0
        %1396 = vmatpush2.msra.mxu0 0.0
        %1397 = vmatprep.subr.mxu0 0.0
        %1398 = vmatpush2.msra.mxu0 0.0
        %1399 = vmatprep.subr.mxu0 0.0
        %1400 = vmatpush2.msra.mxu0 0.0
        %1401 = vmatprep.subr.mxu0 0.0
        %1402 = vmatpush2.msra.mxu0 0.0
        %1403 = vmatprep.subr.mxu0 0.0
        %1404 = vmatpush2.msra.mxu0 0.0
        %1405 = vmatprep.subr.mxu0 0.0
        %1406 = vmatpush2.msra.mxu0 0.0
        %1407 = vmatprep.subr.mxu0 0.0
        %1408 = vmatpush2.msra.mxu0 0.0
        %1409 = vmatprep.subr.mxu0 0.0
        %1410 = vmatpush2.msra.mxu0 0.0
        %1411 = vmatprep.subr.mxu0 0.0
        %1412 = vmatpush2.msra.mxu0 0.0
        %1413 = vmatprep.subr.mxu0 0.0
        %1414 = vmatpush2.msra.mxu0 0.0
        %1415 = vmatprep.subr.mxu0 0.0
        %1416 = vmatpush2.msra.mxu0 0.0
        %1417 = vmatprep.mubr.f32.mxu0 0.0
        %1418 = vmatmul.mubr.f32.gmra.mxu0 %v1351
        %v1419 = vpop.f32.mrf.mxu0
        %v1420 = vadd.f32 0.0, %v1419
        %v1421 = vpop.f32.mrf.mxu0
        %1422 = vdwg.mxu0
        %1425 = vrot.lane.b32.xlu0 %v1344, 8
        %v1426 = vpop.permute.xlu0 %1425
        %1427 = vrot.lane.b32.xlu0 %v1420, 8
        %v1428 = vpop.permute.xlu0 %1427
        %vm1431 = vcmask 130112
        %1432 = vst.msk [vmem:[#allocation2] sm:$0xff] %vm1431, %v1426
        %1433 = vst.msk [vmem:[#allocation2 + $0x8] sm:$0xff] %vm1431, %v1428
        %1434 = vrot.lane.b32.xlu0 %v754, 112
        %v1435 = vpop.permute.xlu0 %1434
        %1436 = vrot.lane.b32.xlu0 %v754, 80
        %v1437 = vpop.permute.xlu0 %1436
        %v1438 = vsel %vm765, %v1435, 0
        %v1440 = vsel %vm765, %v1437, 0
        %1442 = vmatprep.subr.mxu0 0.0
        %1443 = vmatpush1.xpose.msra.mxu0 0.0
        %1444 = vmatprep.subr.mxu0 0.0
        %1445 = vmatpush1.xpose.msra.mxu0 0.0
        %1446 = vmatprep.subr.mxu0 0.0
        %1447 = vmatpush1.xpose.msra.mxu0 0.0
        %1448 = vmatprep.subr.mxu0 0.0
        %1449 = vmatpush1.xpose.msra.mxu0 0.0
        %1450 = vmatprep.subr.mxu0 0.0
        %1451 = vmatpush1.xpose.msra.mxu0 0.0
        %1452 = vmatprep.subr.mxu0 0.0
        %1453 = vmatpush1.xpose.msra.mxu0 0.0
        %1454 = vmatprep.subr.mxu0 0.0
        %1455 = vmatpush1.xpose.msra.mxu0 0.0
        %1456 = vmatprep.subr.mxu0 0.0
        %1457 = vmatpush1.xpose.msra.mxu0 0.0
        %1458 = vmatprep.subr.mxu0 0.0
        %1459 = vmatpush1.xpose.msra.mxu0 0.0
        %1460 = vmatprep.subr.mxu0 0.0
        %1461 = vmatpush1.xpose.msra.mxu0 0.0
        %1462 = vmatprep.subr.mxu0 0.0
        %1463 = vmatpush1.xpose.msra.mxu0 0.0
        %1464 = vmatprep.subr.mxu0 0.0
        %1465 = vmatpush1.xpose.msra.mxu0 0.0
        %1466 = vmatprep.subr.mxu0 0.0
        %1467 = vmatpush1.xpose.msra.mxu0 0.0
        %1468 = vmatprep.subr.mxu0 0.0
        %1469 = vmatpush1.xpose.msra.mxu0 0.0
        %1470 = vmatprep.subr.mxu0 0.0
        %1471 = vmatpush1.xpose.msra.mxu0 0.0
        %1472 = vmatprep.subr.mxu0 0.0
        %1473 = vmatpush1.xpose.msra.mxu0 %v1440
        %1474 = vmatprep.subr.mxu0 0.0
        %1475 = vmatpush2.xpose.msra.mxu0 0.0
        %1476 = vmatprep.subr.mxu0 0.0
        %1477 = vmatpush2.xpose.msra.mxu0 0.0
        %1478 = vmatprep.subr.mxu0 0.0
        %1479 = vmatpush2.xpose.msra.mxu0 0.0
        %1480 = vmatprep.subr.mxu0 0.0
        %1481 = vmatpush2.xpose.msra.mxu0 0.0
        %1482 = vmatprep.subr.mxu0 0.0
        %1483 = vmatpush2.xpose.msra.mxu0 0.0
        %1484 = vmatprep.subr.mxu0 0.0
        %1485 = vmatpush2.xpose.msra.mxu0 0.0
        %1486 = vmatprep.subr.mxu0 0.0
        %1487 = vmatpush2.xpose.msra.mxu0 0.0
        %1488 = vmatprep.subr.mxu0 0.0
        %1489 = vmatpush2.xpose.msra.mxu0 0.0
        %1490 = vmatprep.subr.mxu0 0.0
        %1491 = vmatpush2.xpose.msra.mxu0 0.0
        %1492 = vmatprep.subr.mxu0 0.0
        %1493 = vmatpush2.xpose.msra.mxu0 0.0
        %1494 = vmatprep.subr.mxu0 0.0
        %1495 = vmatpush2.xpose.msra.mxu0 0.0
        %1496 = vmatprep.subr.mxu0 0.0
        %1497 = vmatpush2.xpose.msra.mxu0 0.0
        %1498 = vmatprep.subr.mxu0 0.0
        %1499 = vmatpush2.xpose.msra.mxu0 0.0
        %1500 = vmatprep.subr.mxu0 0.0
        %1501 = vmatpush2.xpose.msra.mxu0 0.0
        %1502 = vmatprep.subr.mxu0 0.0
        %1503 = vmatpush2.xpose.msra.mxu0 0.0
        %1504 = vmatprep.subr.mxu0 0.0
        %1505 = vmatpush2.xpose.msra.mxu0 0.0
        %1506 = vmatprep.mubr.f32.mxu0 0.0
        %1507 = vmatmul.mubr.f32.gmra.mxu0 %v1438
        %v1508 = vpop.f32.mrf.mxu0
        %v1509 = vadd.f32 0.0, %v1508
        %v1510 = vpop.f32.mrf.mxu0
        %1511 = vdwg.mxu0
        %1512 = vrot.lane.b32.xlu0 %v759, 112
        %v1513 = vpop.permute.xlu0 %1512
        %1514 = vrot.lane.b32.xlu0 %v759, 80
        %v1515 = vpop.permute.xlu0 %1514
        %v1516 = vsel %vm765, %v1513, 0
        %v1518 = vsel %vm765, %v1515, 0
        %1520 = vmatprep.subr.mxu0 0.0
        %1521 = vmatpush1.xpose.msra.mxu0 0.0
        %1522 = vmatprep.subr.mxu0 0.0
        %1523 = vmatpush1.xpose.msra.mxu0 0.0
        %1524 = vmatprep.subr.mxu0 0.0
        %1525 = vmatpush1.xpose.msra.mxu0 0.0
        %1526 = vmatprep.subr.mxu0 0.0
        %1527 = vmatpush1.xpose.msra.mxu0 0.0
        %1528 = vmatprep.subr.mxu0 0.0
        %1529 = vmatpush1.xpose.msra.mxu0 0.0
        %1530 = vmatprep.subr.mxu0 0.0
        %1531 = vmatpush1.xpose.msra.mxu0 0.0
        %1532 = vmatprep.subr.mxu0 0.0
        %1533 = vmatpush1.xpose.msra.mxu0 0.0
        %1534 = vmatprep.subr.mxu0 0.0
        %1535 = vmatpush1.xpose.msra.mxu0 0.0
        %1536 = vmatprep.subr.mxu0 0.0
        %1537 = vmatpush1.xpose.msra.mxu0 0.0
        %1538 = vmatprep.subr.mxu0 0.0
        %1539 = vmatpush1.xpose.msra.mxu0 0.0
        %1540 = vmatprep.subr.mxu0 0.0
        %1541 = vmatpush1.xpose.msra.mxu0 0.0
        %1542 = vmatprep.subr.mxu0 0.0
        %1543 = vmatpush1.xpose.msra.mxu0 0.0
        %1544 = vmatprep.subr.mxu0 0.0
        %1545 = vmatpush1.xpose.msra.mxu0 0.0
        %1546 = vmatprep.subr.mxu0 0.0
        %1547 = vmatpush1.xpose.msra.mxu0 0.0
        %1548 = vmatprep.subr.mxu0 0.0
        %1549 = vmatpush1.xpose.msra.mxu0 0.0
        %1550 = vmatprep.subr.mxu0 0.0
        %1551 = vmatpush1.xpose.msra.mxu0 %v1518
        %1552 = vmatprep.subr.mxu0 0.0
        %1553 = vmatpush2.xpose.msra.mxu0 0.0
        %1554 = vmatprep.subr.mxu0 0.0
        %1555 = vmatpush2.xpose.msra.mxu0 0.0
        %1556 = vmatprep.subr.mxu0 0.0
        %1557 = vmatpush2.xpose.msra.mxu0 0.0
        %1558 = vmatprep.subr.mxu0 0.0
        %1559 = vmatpush2.xpose.msra.mxu0 0.0
        %1560 = vmatprep.subr.mxu0 0.0
        %1561 = vmatpush2.xpose.msra.mxu0 0.0
        %1562 = vmatprep.subr.mxu0 0.0
        %1563 = vmatpush2.xpose.msra.mxu0 0.0
        %1564 = vmatprep.subr.mxu0 0.0
        %1565 = vmatpush2.xpose.msra.mxu0 0.0
        %1566 = vmatprep.subr.mxu0 0.0
        %1567 = vmatpush2.xpose.msra.mxu0 0.0
        %1568 = vmatprep.subr.mxu0 0.0
        %1569 = vmatpush2.xpose.msra.mxu0 0.0
        %1570 = vmatprep.subr.mxu0 0.0
        %1571 = vmatpush2.xpose.msra.mxu0 0.0
        %1572 = vmatprep.subr.mxu0 0.0
        %1573 = vmatpush2.xpose.msra.mxu0 0.0
        %1574 = vmatprep.subr.mxu0 0.0
        %1575 = vmatpush2.xpose.msra.mxu0 0.0
        %1576 = vmatprep.subr.mxu0 0.0
        %1577 = vmatpush2.xpose.msra.mxu0 0.0
        %1578 = vmatprep.subr.mxu0 0.0
        %1579 = vmatpush2.xpose.msra.mxu0 0.0
        %1580 = vmatprep.subr.mxu0 0.0
        %1581 = vmatpush2.xpose.msra.mxu0 0.0
        %1582 = vmatprep.subr.mxu0 0.0
        %1583 = vmatpush2.xpose.msra.mxu0 0.0
        %1584 = vmatprep.mubr.f32.mxu0 0.0
        %1585 = vmatmul.mubr.f32.gmra.mxu0 %v1516
        %v1586 = vpop.f32.mrf.mxu0
        %v1587 = vadd.f32 0.0, %v1586
        %v1588 = vpop.f32.mrf.mxu0
        %1589 = vdwg.mxu0
        %v1590 = vsel %vm765, %v1509, -inf
        %1591 = vmax.xlane.f32.xlu0 %v1590
        %v1592 = vpop.xlane.xlu0 %1591
        %v1593 = vsel %vm765, %v1587, -inf
        %1594 = vmax.xlane.f32.xlu0 %v1593
        %v1595 = vpop.xlane.xlu0 %1594
        %v1596 = vsub.f32 %v1509, %v1592
        %v1597 = vsub.f32 %v1587, %v1595
        %v1598 = vmul.f32 %v1596, 1.442695
        %v1599 = vpow.pop %v1598
        %v1600 = vmul.f32 %v1597, 1.442695
        %v1601 = vpow.pop %v1600
        %v1602 = vsel %vm765, %v1599, 0.0
        %1603 = vadd.xlane.f32.xlu0 %v1602
        %v1604 = vpop.xlane.xlu0 %1603
        %v1605 = vsel %vm765, %v1601, 0.0
        %1606 = vadd.xlane.f32.xlu0 %v1605
        %v1607 = vpop.xlane.xlu0 %1606
        %v1608 = vrcp.pop %v1604
        %v1609 = vrcp.pop %v1607
        %v1610 = vmul.f32 %v1599, %v1608
        %v1611 = vmul.f32 %v1601, %v1609
        %1612 = vrot.lane.b32.xlu0 %v754, 48
        %v1613 = vpop.permute.xlu0 %1612
        %v1616 = vsel %vm765, %v1610, 0
        %1618 = vmatprep.subr.mxu0 0.0
        %1619 = vmatpush1.msra.mxu0 0.0
        %1620 = vmatprep.subr.mxu0 0.0
        %1621 = vmatpush1.msra.mxu0 0.0
        %1622 = vmatprep.subr.mxu0 0.0
        %1623 = vmatpush1.msra.mxu0 0.0
        %1624 = vmatprep.subr.mxu0 0.0
        %1625 = vmatpush1.msra.mxu0 0.0
        %1626 = vmatprep.subr.mxu0 0.0
        %1627 = vmatpush1.msra.mxu0 0.0
        %1628 = vmatprep.subr.mxu0 0.0
        %1629 = vmatpush1.msra.mxu0 0.0
        %1630 = vmatprep.subr.mxu0 0.0
        %1631 = vmatpush1.msra.mxu0 0.0
        %1632 = vmatprep.subr.mxu0 0.0
        %1633 = vmatpush1.msra.mxu0 0.0
        %1634 = vmatprep.subr.mxu0 0.0
        %1635 = vmatpush1.msra.mxu0 0.0
        %1636 = vmatprep.subr.mxu0 0.0
        %1637 = vmatpush1.msra.mxu0 0.0
        %1638 = vmatprep.subr.mxu0 0.0
        %1639 = vmatpush1.msra.mxu0 0.0
        %1640 = vmatprep.subr.mxu0 0.0
        %1641 = vmatpush1.msra.mxu0 0.0
        %1642 = vmatprep.subr.mxu0 0.0
        %1643 = vmatpush1.msra.mxu0 0.0
        %1644 = vmatprep.subr.mxu0 0.0
        %1645 = vmatpush1.msra.mxu0 0.0
        %1646 = vmatprep.subr.mxu0 0.0
        %1647 = vmatpush1.msra.mxu0 0.0
        %1648 = vmatprep.subr.mxu0 0.0
        %1649 = vmatpush1.msra.mxu0 %v1613
        %1650 = vmatprep.subr.mxu0 0.0
        %1651 = vmatpush2.msra.mxu0 0.0
        %1652 = vmatprep.subr.mxu0 0.0
        %1653 = vmatpush2.msra.mxu0 0.0
        %1654 = vmatprep.subr.mxu0 0.0
        %1655 = vmatpush2.msra.mxu0 0.0
        %1656 = vmatprep.subr.mxu0 0.0
        %1657 = vmatpush2.msra.mxu0 0.0
        %1658 = vmatprep.subr.mxu0 0.0
        %1659 = vmatpush2.msra.mxu0 0.0
        %1660 = vmatprep.subr.mxu0 0.0
        %1661 = vmatpush2.msra.mxu0 0.0
        %1662 = vmatprep.subr.mxu0 0.0
        %1663 = vmatpush2.msra.mxu0 0.0
        %1664 = vmatprep.subr.mxu0 0.0
        %1665 = vmatpush2.msra.mxu0 0.0
        %1666 = vmatprep.subr.mxu0 0.0
        %1667 = vmatpush2.msra.mxu0 0.0
        %1668 = vmatprep.subr.mxu0 0.0
        %1669 = vmatpush2.msra.mxu0 0.0
        %1670 = vmatprep.subr.mxu0 0.0
        %1671 = vmatpush2.msra.mxu0 0.0
        %1672 = vmatprep.subr.mxu0 0.0
        %1673 = vmatpush2.msra.mxu0 0.0
        %1674 = vmatprep.subr.mxu0 0.0
        %1675 = vmatpush2.msra.mxu0 0.0
        %1676 = vmatprep.subr.mxu0 0.0
        %1677 = vmatpush2.msra.mxu0 0.0
        %1678 = vmatprep.subr.mxu0 0.0
        %1679 = vmatpush2.msra.mxu0 0.0
        %1680 = vmatprep.subr.mxu0 0.0
        %1681 = vmatpush2.msra.mxu0 0.0
        %1682 = vmatprep.mubr.f32.mxu0 0.0
        %1683 = vmatmul.mubr.f32.gmra.mxu0 %v1616
        %v1684 = vpop.f32.mrf.mxu0
        %v1685 = vadd.f32 0.0, %v1684
        %v1686 = vpop.f32.mrf.mxu0
        %1687 = vdwg.mxu0
        %1688 = vrot.lane.b32.xlu0 %v759, 48
        %v1689 = vpop.permute.xlu0 %1688
        %v1692 = vsel %vm765, %v1611, 0
        %1694 = vmatprep.subr.mxu0 0.0
        %1695 = vmatpush1.msra.mxu0 0.0
        %1696 = vmatprep.subr.mxu0 0.0
        %1697 = vmatpush1.msra.mxu0 0.0
        %1698 = vmatprep.subr.mxu0 0.0
        %1699 = vmatpush1.msra.mxu0 0.0
        %1700 = vmatprep.subr.mxu0 0.0
        %1701 = vmatpush1.msra.mxu0 0.0
        %1702 = vmatprep.subr.mxu0 0.0
        %1703 = vmatpush1.msra.mxu0 0.0
        %1704 = vmatprep.subr.mxu0 0.0
        %1705 = vmatpush1.msra.mxu0 0.0
        %1706 = vmatprep.subr.mxu0 0.0
        %1707 = vmatpush1.msra.mxu0 0.0
        %1708 = vmatprep.subr.mxu0 0.0
        %1709 = vmatpush1.msra.mxu0 0.0
        %1710 = vmatprep.subr.mxu0 0.0
        %1711 = vmatpush1.msra.mxu0 0.0
        %1712 = vmatprep.subr.mxu0 0.0
        %1713 = vmatpush1.msra.mxu0 0.0
        %1714 = vmatprep.subr.mxu0 0.0
        %1715 = vmatpush1.msra.mxu0 0.0
        %1716 = vmatprep.subr.mxu0 0.0
        %1717 = vmatpush1.msra.mxu0 0.0
        %1718 = vmatprep.subr.mxu0 0.0
        %1719 = vmatpush1.msra.mxu0 0.0
        %1720 = vmatprep.subr.mxu0 0.0
        %1721 = vmatpush1.msra.mxu0 0.0
        %1722 = vmatprep.subr.mxu0 0.0
        %1723 = vmatpush1.msra.mxu0 0.0
        %1724 = vmatprep.subr.mxu0 0.0
        %1725 = vmatpush1.msra.mxu0 %v1689
        %1726 = vmatprep.subr.mxu0 0.0
        %1727 = vmatpush2.msra.mxu0 0.0
        %1728 = vmatprep.subr.mxu0 0.0
        %1729 = vmatpush2.msra.mxu0 0.0
        %1730 = vmatprep.subr.mxu0 0.0
        %1731 = vmatpush2.msra.mxu0 0.0
        %1732 = vmatprep.subr.mxu0 0.0
        %1733 = vmatpush2.msra.mxu0 0.0
        %1734 = vmatprep.subr.mxu0 0.0
        %1735 = vmatpush2.msra.mxu0 0.0
        %1736 = vmatprep.subr.mxu0 0.0
        %1737 = vmatpush2.msra.mxu0 0.0
        %1738 = vmatprep.subr.mxu0 0.0
        %1739 = vmatpush2.msra.mxu0 0.0
        %1740 = vmatprep.subr.mxu0 0.0
        %1741 = vmatpush2.msra.mxu0 0.0
        %1742 = vmatprep.subr.mxu0 0.0
        %1743 = vmatpush2.msra.mxu0 0.0
        %1744 = vmatprep.subr.mxu0 0.0
        %1745 = vmatpush2.msra.mxu0 0.0
        %1746 = vmatprep.subr.mxu0 0.0
        %1747 = vmatpush2.msra.mxu0 0.0
        %1748 = vmatprep.subr.mxu0 0.0
        %1749 = vmatpush2.msra.mxu0 0.0
        %1750 = vmatprep.subr.mxu0 0.0
        %1751 = vmatpush2.msra.mxu0 0.0
        %1752 = vmatprep.subr.mxu0 0.0
        %1753 = vmatpush2.msra.mxu0 0.0
        %1754 = vmatprep.subr.mxu0 0.0
        %1755 = vmatpush2.msra.mxu0 0.0
        %1756 = vmatprep.subr.mxu0 0.0
        %1757 = vmatpush2.msra.mxu0 0.0
        %1758 = vmatprep.mubr.f32.mxu0 0.0
        %1759 = vmatmul.mubr.f32.gmra.mxu0 %v1692
        %v1760 = vpop.f32.mrf.mxu0
        %v1761 = vadd.f32 0.0, %v1760
        %v1762 = vpop.f32.mrf.mxu0
        %1763 = vdwg.mxu0
        %1766 = vrot.lane.b32.xlu0 %v1685, 16
        %v1767 = vpop.permute.xlu0 %1766
        %1768 = vrot.lane.b32.xlu0 %v1761, 16
        %v1769 = vpop.permute.xlu0 %1768
        %vm1772 = vcmask 195712
        %1773 = vst.msk [vmem:[#allocation2] sm:$0xff] %vm1772, %v1767
        %1774 = vst.msk [vmem:[#allocation2 + $0x8] sm:$0xff] %vm1772, %v1769
        %1775 = vrot.lane.b32.xlu0 %v754, 104
        %v1776 = vpop.permute.xlu0 %1775
        %1777 = vrot.lane.b32.xlu0 %v754, 72
        %v1778 = vpop.permute.xlu0 %1777
        %v1779 = vsel %vm765, %v1776, 0
        %v1781 = vsel %vm765, %v1778, 0
        %1783 = vmatprep.subr.mxu0 0.0
        %1784 = vmatpush1.xpose.msra.mxu0 0.0
        %1785 = vmatprep.subr.mxu0 0.0
        %1786 = vmatpush1.xpose.msra.mxu0 0.0
        %1787 = vmatprep.subr.mxu0 0.0
        %1788 = vmatpush1.xpose.msra.mxu0 0.0
        %1789 = vmatprep.subr.mxu0 0.0
        %1790 = vmatpush1.xpose.msra.mxu0 0.0
        %1791 = vmatprep.subr.mxu0 0.0
        %1792 = vmatpush1.xpose.msra.mxu0 0.0
        %1793 = vmatprep.subr.mxu0 0.0
        %1794 = vmatpush1.xpose.msra.mxu0 0.0
        %1795 = vmatprep.subr.mxu0 0.0
        %1796 = vmatpush1.xpose.msra.mxu0 0.0
        %1797 = vmatprep.subr.mxu0 0.0
        %1798 = vmatpush1.xpose.msra.mxu0 0.0
        %1799 = vmatprep.subr.mxu0 0.0
        %1800 = vmatpush1.xpose.msra.mxu0 0.0
        %1801 = vmatprep.subr.mxu0 0.0
        %1802 = vmatpush1.xpose.msra.mxu0 0.0
        %1803 = vmatprep.subr.mxu0 0.0
        %1804 = vmatpush1.xpose.msra.mxu0 0.0
        %1805 = vmatprep.subr.mxu0 0.0
        %1806 = vmatpush1.xpose.msra.mxu0 0.0
        %1807 = vmatprep.subr.mxu0 0.0
        %1808 = vmatpush1.xpose.msra.mxu0 0.0
        %1809 = vmatprep.subr.mxu0 0.0
        %1810 = vmatpush1.xpose.msra.mxu0 0.0
        %1811 = vmatprep.subr.mxu0 0.0
        %1812 = vmatpush1.xpose.msra.mxu0 0.0
        %1813 = vmatprep.subr.mxu0 0.0
        %1814 = vmatpush1.xpose.msra.mxu0 %v1781
        %1815 = vmatprep.subr.mxu0 0.0
        %1816 = vmatpush2.xpose.msra.mxu0 0.0
        %1817 = vmatprep.subr.mxu0 0.0
        %1818 = vmatpush2.xpose.msra.mxu0 0.0
        %1819 = vmatprep.subr.mxu0 0.0
        %1820 = vmatpush2.xpose.msra.mxu0 0.0
        %1821 = vmatprep.subr.mxu0 0.0
        %1822 = vmatpush2.xpose.msra.mxu0 0.0
        %1823 = vmatprep.subr.mxu0 0.0
        %1824 = vmatpush2.xpose.msra.mxu0 0.0
        %1825 = vmatprep.subr.mxu0 0.0
        %1826 = vmatpush2.xpose.msra.mxu0 0.0
        %1827 = vmatprep.subr.mxu0 0.0
        %1828 = vmatpush2.xpose.msra.mxu0 0.0
        %1829 = vmatprep.subr.mxu0 0.0
        %1830 = vmatpush2.xpose.msra.mxu0 0.0
        %1831 = vmatprep.subr.mxu0 0.0
        %1832 = vmatpush2.xpose.msra.mxu0 0.0
        %1833 = vmatprep.subr.mxu0 0.0
        %1834 = vmatpush2.xpose.msra.mxu0 0.0
        %1835 = vmatprep.subr.mxu0 0.0
        %1836 = vmatpush2.xpose.msra.mxu0 0.0
        %1837 = vmatprep.subr.mxu0 0.0
        %1838 = vmatpush2.xpose.msra.mxu0 0.0
        %1839 = vmatprep.subr.mxu0 0.0
        %1840 = vmatpush2.xpose.msra.mxu0 0.0
        %1841 = vmatprep.subr.mxu0 0.0
        %1842 = vmatpush2.xpose.msra.mxu0 0.0
        %1843 = vmatprep.subr.mxu0 0.0
        %1844 = vmatpush2.xpose.msra.mxu0 0.0
        %1845 = vmatprep.subr.mxu0 0.0
        %1846 = vmatpush2.xpose.msra.mxu0 0.0
        %1847 = vmatprep.mubr.f32.mxu0 0.0
        %1848 = vmatmul.mubr.f32.gmra.mxu0 %v1779
        %v1849 = vpop.f32.mrf.mxu0
        %v1850 = vadd.f32 0.0, %v1849
        %v1851 = vpop.f32.mrf.mxu0
        %1852 = vdwg.mxu0
        %1853 = vrot.lane.b32.xlu0 %v759, 104
        %v1854 = vpop.permute.xlu0 %1853
        %1855 = vrot.lane.b32.xlu0 %v759, 72
        %v1856 = vpop.permute.xlu0 %1855
        %v1857 = vsel %vm765, %v1854, 0
        %v1859 = vsel %vm765, %v1856, 0
        %1861 = vmatprep.subr.mxu0 0.0
        %1862 = vmatpush1.xpose.msra.mxu0 0.0
        %1863 = vmatprep.subr.mxu0 0.0
        %1864 = vmatpush1.xpose.msra.mxu0 0.0
        %1865 = vmatprep.subr.mxu0 0.0
        %1866 = vmatpush1.xpose.msra.mxu0 0.0
        %1867 = vmatprep.subr.mxu0 0.0
        %1868 = vmatpush1.xpose.msra.mxu0 0.0
        %1869 = vmatprep.subr.mxu0 0.0
        %1870 = vmatpush1.xpose.msra.mxu0 0.0
        %1871 = vmatprep.subr.mxu0 0.0
        %1872 = vmatpush1.xpose.msra.mxu0 0.0
        %1873 = vmatprep.subr.mxu0 0.0
        %1874 = vmatpush1.xpose.msra.mxu0 0.0
        %1875 = vmatprep.subr.mxu0 0.0
        %1876 = vmatpush1.xpose.msra.mxu0 0.0
        %1877 = vmatprep.subr.mxu0 0.0
        %1878 = vmatpush1.xpose.msra.mxu0 0.0
        %1879 = vmatprep.subr.mxu0 0.0
        %1880 = vmatpush1.xpose.msra.mxu0 0.0
        %1881 = vmatprep.subr.mxu0 0.0
        %1882 = vmatpush1.xpose.msra.mxu0 0.0
        %1883 = vmatprep.subr.mxu0 0.0
        %1884 = vmatpush1.xpose.msra.mxu0 0.0
        %1885 = vmatprep.subr.mxu0 0.0
        %1886 = vmatpush1.xpose.msra.mxu0 0.0
        %1887 = vmatprep.subr.mxu0 0.0
        %1888 = vmatpush1.xpose.msra.mxu0 0.0
        %1889 = vmatprep.subr.mxu0 0.0
        %1890 = vmatpush1.xpose.msra.mxu0 0.0
        %1891 = vmatprep.subr.mxu0 0.0
        %1892 = vmatpush1.xpose.msra.mxu0 %v1859
        %1893 = vmatprep.subr.mxu0 0.0
        %1894 = vmatpush2.xpose.msra.mxu0 0.0
        %1895 = vmatprep.subr.mxu0 0.0
        %1896 = vmatpush2.xpose.msra.mxu0 0.0
        %1897 = vmatprep.subr.mxu0 0.0
        %1898 = vmatpush2.xpose.msra.mxu0 0.0
        %1899 = vmatprep.subr.mxu0 0.0
        %1900 = vmatpush2.xpose.msra.mxu0 0.0
        %1901 = vmatprep.subr.mxu0 0.0
        %1902 = vmatpush2.xpose.msra.mxu0 0.0
        %1903 = vmatprep.subr.mxu0 0.0
        %1904 = vmatpush2.xpose.msra.mxu0 0.0
        %1905 = vmatprep.subr.mxu0 0.0
        %1906 = vmatpush2.xpose.msra.mxu0 0.0
        %1907 = vmatprep.subr.mxu0 0.0
        %1908 = vmatpush2.xpose.msra.mxu0 0.0
        %1909 = vmatprep.subr.mxu0 0.0
        %1910 = vmatpush2.xpose.msra.mxu0 0.0
        %1911 = vmatprep.subr.mxu0 0.0
        %1912 = vmatpush2.xpose.msra.mxu0 0.0
        %1913 = vmatprep.subr.mxu0 0.0
        %1914 = vmatpush2.xpose.msra.mxu0 0.0
        %1915 = vmatprep.subr.mxu0 0.0
        %1916 = vmatpush2.xpose.msra.mxu0 0.0
        %1917 = vmatprep.subr.mxu0 0.0
        %1918 = vmatpush2.xpose.msra.mxu0 0.0
        %1919 = vmatprep.subr.mxu0 0.0
        %1920 = vmatpush2.xpose.msra.mxu0 0.0
        %1921 = vmatprep.subr.mxu0 0.0
        %1922 = vmatpush2.xpose.msra.mxu0 0.0
        %1923 = vmatprep.subr.mxu0 0.0
        %1924 = vmatpush2.xpose.msra.mxu0 0.0
        %1925 = vmatprep.mubr.f32.mxu0 0.0
        %1926 = vmatmul.mubr.f32.gmra.mxu0 %v1857
        %v1927 = vpop.f32.mrf.mxu0
        %v1928 = vadd.f32 0.0, %v1927
        %v1929 = vpop.f32.mrf.mxu0
        %1930 = vdwg.mxu0
        %v1931 = vsel %vm765, %v1850, -inf
        %1932 = vmax.xlane.f32.xlu0 %v1931
        %v1933 = vpop.xlane.xlu0 %1932
        %v1934 = vsel %vm765, %v1928, -inf
        %1935 = vmax.xlane.f32.xlu0 %v1934
        %v1936 = vpop.xlane.xlu0 %1935
        %v1937 = vsub.f32 %v1850, %v1933
        %v1938 = vsub.f32 %v1928, %v1936
        %v1939 = vmul.f32 %v1937, 1.442695
        %v1940 = vpow.pop %v1939
        %v1941 = vmul.f32 %v1938, 1.442695
        %v1942 = vpow.pop %v1941
        %v1943 = vsel %vm765, %v1940, 0.0
        %1944 = vadd.xlane.f32.xlu0 %v1943
        %v1945 = vpop.xlane.xlu0 %1944
        %v1946 = vsel %vm765, %v1942, 0.0
        %1947 = vadd.xlane.f32.xlu0 %v1946
        %v1948 = vpop.xlane.xlu0 %1947
        %v1949 = vrcp.pop %v1945
        %v1950 = vrcp.pop %v1948
        %v1951 = vmul.f32 %v1940, %v1949
        %v1952 = vmul.f32 %v1942, %v1950
        %1953 = vrot.lane.b32.xlu0 %v754, 40
        %v1954 = vpop.permute.xlu0 %1953
        %v1957 = vsel %vm765, %v1951, 0
        %1959 = vmatprep.subr.mxu0 0.0
        %1960 = vmatpush1.msra.mxu0 0.0
        %1961 = vmatprep.subr.mxu0 0.0
        %1962 = vmatpush1.msra.mxu0 0.0
        %1963 = vmatprep.subr.mxu0 0.0
        %1964 = vmatpush1.msra.mxu0 0.0
        %1965 = vmatprep.subr.mxu0 0.0
        %1966 = vmatpush1.msra.mxu0 0.0
        %1967 = vmatprep.subr.mxu0 0.0
        %1968 = vmatpush1.msra.mxu0 0.0
        %1969 = vmatprep.subr.mxu0 0.0
        %1970 = vmatpush1.msra.mxu0 0.0
        %1971 = vmatprep.subr.mxu0 0.0
        %1972 = vmatpush1.msra.mxu0 0.0
        %1973 = vmatprep.subr.mxu0 0.0
        %1974 = vmatpush1.msra.mxu0 0.0
        %1975 = vmatprep.subr.mxu0 0.0
        %1976 = vmatpush1.msra.mxu0 0.0
        %1977 = vmatprep.subr.mxu0 0.0
        %1978 = vmatpush1.msra.mxu0 0.0
        %1979 = vmatprep.subr.mxu0 0.0
        %1980 = vmatpush1.msra.mxu0 0.0
        %1981 = vmatprep.subr.mxu0 0.0
        %1982 = vmatpush1.msra.mxu0 0.0
        %1983 = vmatprep.subr.mxu0 0.0
        %1984 = vmatpush1.msra.mxu0 0.0
        %1985 = vmatprep.subr.mxu0 0.0
        %1986 = vmatpush1.msra.mxu0 0.0
        %1987 = vmatprep.subr.mxu0 0.0
        %1988 = vmatpush1.msra.mxu0 0.0
        %1989 = vmatprep.subr.mxu0 0.0
        %1990 = vmatpush1.msra.mxu0 %v1954
        %1991 = vmatprep.subr.mxu0 0.0
        %1992 = vmatpush2.msra.mxu0 0.0
        %1993 = vmatprep.subr.mxu0 0.0
        %1994 = vmatpush2.msra.mxu0 0.0
        %1995 = vmatprep.subr.mxu0 0.0
        %1996 = vmatpush2.msra.mxu0 0.0
        %1997 = vmatprep.subr.mxu0 0.0
        %1998 = vmatpush2.msra.mxu0 0.0
        %1999 = vmatprep.subr.mxu0 0.0
        %2000 = vmatpush2.msra.mxu0 0.0
        %2001 = vmatprep.subr.mxu0 0.0
        %2002 = vmatpush2.msra.mxu0 0.0
        %2003 = vmatprep.subr.mxu0 0.0
        %2004 = vmatpush2.msra.mxu0 0.0
        %2005 = vmatprep.subr.mxu0 0.0
        %2006 = vmatpush2.msra.mxu0 0.0
        %2007 = vmatprep.subr.mxu0 0.0
        %2008 = vmatpush2.msra.mxu0 0.0
        %2009 = vmatprep.subr.mxu0 0.0
        %2010 = vmatpush2.msra.mxu0 0.0
        %2011 = vmatprep.subr.mxu0 0.0
        %2012 = vmatpush2.msra.mxu0 0.0
        %2013 = vmatprep.subr.mxu0 0.0
        %2014 = vmatpush2.msra.mxu0 0.0
        %2015 = vmatprep.subr.mxu0 0.0
        %2016 = vmatpush2.msra.mxu0 0.0
        %2017 = vmatprep.subr.mxu0 0.0
        %2018 = vmatpush2.msra.mxu0 0.0
        %2019 = vmatprep.subr.mxu0 0.0
        %2020 = vmatpush2.msra.mxu0 0.0
        %2021 = vmatprep.subr.mxu0 0.0
        %2022 = vmatpush2.msra.mxu0 0.0
        %2023 = vmatprep.mubr.f32.mxu0 0.0
        %2024 = vmatmul.mubr.f32.gmra.mxu0 %v1957
        %v2025 = vpop.f32.mrf.mxu0
        %v2026 = vadd.f32 0.0, %v2025
        %v2027 = vpop.f32.mrf.mxu0
        %2028 = vdwg.mxu0
        %2029 = vrot.lane.b32.xlu0 %v759, 40
        %v2030 = vpop.permute.xlu0 %2029
        %v2033 = vsel %vm765, %v1952, 0
        %2035 = vmatprep.subr.mxu0 0.0
        %2036 = vmatpush1.msra.mxu0 0.0
        %2037 = vmatprep.subr.mxu0 0.0
        %2038 = vmatpush1.msra.mxu0 0.0
        %2039 = vmatprep.subr.mxu0 0.0
        %2040 = vmatpush1.msra.mxu0 0.0
        %2041 = vmatprep.subr.mxu0 0.0
        %2042 = vmatpush1.msra.mxu0 0.0
        %2043 = vmatprep.subr.mxu0 0.0
        %2044 = vmatpush1.msra.mxu0 0.0
        %2045 = vmatprep.subr.mxu0 0.0
        %2046 = vmatpush1.msra.mxu0 0.0
        %2047 = vmatprep.subr.mxu0 0.0
        %2048 = vmatpush1.msra.mxu0 0.0
        %2049 = vmatprep.subr.mxu0 0.0
        %2050 = vmatpush1.msra.mxu0 0.0
        %2051 = vmatprep.subr.mxu0 0.0
        %2052 = vmatpush1.msra.mxu0 0.0
        %2053 = vmatprep.subr.mxu0 0.0
        %2054 = vmatpush1.msra.mxu0 0.0
        %2055 = vmatprep.subr.mxu0 0.0
        %2056 = vmatpush1.msra.mxu0 0.0
        %2057 = vmatprep.subr.mxu0 0.0
        %2058 = vmatpush1.msra.mxu0 0.0
        %2059 = vmatprep.subr.mxu0 0.0
        %2060 = vmatpush1.msra.mxu0 0.0
        %2061 = vmatprep.subr.mxu0 0.0
        %2062 = vmatpush1.msra.mxu0 0.0
        %2063 = vmatprep.subr.mxu0 0.0
        %2064 = vmatpush1.msra.mxu0 0.0
        %2065 = vmatprep.subr.mxu0 0.0
        %2066 = vmatpush1.msra.mxu0 %v2030
        %2067 = vmatprep.subr.mxu0 0.0
        %2068 = vmatpush2.msra.mxu0 0.0
        %2069 = vmatprep.subr.mxu0 0.0
        %2070 = vmatpush2.msra.mxu0 0.0
        %2071 = vmatprep.subr.mxu0 0.0
        %2072 = vmatpush2.msra.mxu0 0.0
        %2073 = vmatprep.subr.mxu0 0.0
        %2074 = vmatpush2.msra.mxu0 0.0
        %2075 = vmatprep.subr.mxu0 0.0
        %2076 = vmatpush2.msra.mxu0 0.0
        %2077 = vmatprep.subr.mxu0 0.0
        %2078 = vmatpush2.msra.mxu0 0.0
        %2079 = vmatprep.subr.mxu0 0.0
        %2080 = vmatpush2.msra.mxu0 0.0
        %2081 = vmatprep.subr.mxu0 0.0
        %2082 = vmatpush2.msra.mxu0 0.0
        %2083 = vmatprep.subr.mxu0 0.0
        %2084 = vmatpush2.msra.mxu0 0.0
        %2085 = vmatprep.subr.mxu0 0.0
        %2086 = vmatpush2.msra.mxu0 0.0
        %2087 = vmatprep.subr.mxu0 0.0
        %2088 = vmatpush2.msra.mxu0 0.0
        %2089 = vmatprep.subr.mxu0 0.0
        %2090 = vmatpush2.msra.mxu0 0.0
        %2091 = vmatprep.subr.mxu0 0.0
        %2092 = vmatpush2.msra.mxu0 0.0
        %2093 = vmatprep.subr.mxu0 0.0
        %2094 = vmatpush2.msra.mxu0 0.0
        %2095 = vmatprep.subr.mxu0 0.0
        %2096 = vmatpush2.msra.mxu0 0.0
        %2097 = vmatprep.subr.mxu0 0.0
        %2098 = vmatpush2.msra.mxu0 0.0
        %2099 = vmatprep.mubr.f32.mxu0 0.0
        %2100 = vmatmul.mubr.f32.gmra.mxu0 %v2033
        %v2101 = vpop.f32.mrf.mxu0
        %v2102 = vadd.f32 0.0, %v2101
        %v2103 = vpop.f32.mrf.mxu0
        %2104 = vdwg.mxu0
        %2107 = vrot.lane.b32.xlu0 %v2026, 24
        %v2108 = vpop.permute.xlu0 %2107
        %2109 = vrot.lane.b32.xlu0 %v2102, 24
        %v2110 = vpop.permute.xlu0 %2109
        %vm2113 = vcmask 261312
        %2114 = vst.msk [vmem:[#allocation2] sm:$0xff] %vm2113, %v2108
        %2115 = vst.msk [vmem:[#allocation2 + $0x8] sm:$0xff] %vm2113, %v2110
        %v2116 = vld [vmem:[#allocation2] sm:$0xff]
        %v2117 = vld [vmem:[#allocation2 + $0x8] sm:$0xff]
        %v2118 = vld [vmem:[%s593] sm:$0xff]
        %v2119 = vld [vmem:[%s593 + $0x8] sm:$0xff]
        %v2120 = vld [vmem:[%s593 + $0x10] sm:$0xff]
        %v2121 = vld [vmem:[%s593 + $0x18] sm:$0xff]
        %v2122 = vld [vmem:[%s596] sm:$0x1]
        %v2124 = vlaneseq
        %v2125 = vshrl.u32 %v2124, 7
        %v2126 = vsub.s32 0, %v2125
        %v2127 = vrot.slane %v2122, %v2126
        %v2130 = vsel %vm633, %v2116, 0
        %v2133 = vsel %vm633, %v2117, 0
        %2135 = vmatprep.subr.mxu0 0.0
        %2136 = vmatpush1.msra.mxu0 0.0
        %2137 = vmatprep.subr.mxu0 0.0
        %2138 = vmatpush1.msra.mxu0 0.0
        %2139 = vmatprep.subr.mxu0 0.0
        %2140 = vmatpush1.msra.mxu0 0.0
        %2141 = vmatprep.subr.mxu0 0.0
        %2142 = vmatpush1.msra.mxu0 0.0
        %2143 = vmatprep.subr.mxu0 0.0
        %2144 = vmatpush1.msra.mxu0 0.0
        %2145 = vmatprep.subr.mxu0 0.0
        %2146 = vmatpush1.msra.mxu0 0.0
        %2147 = vmatprep.subr.mxu0 0.0
        %2148 = vmatpush1.msra.mxu0 0.0
        %2149 = vmatprep.subr.mxu0 0.0
        %2150 = vmatpush1.msra.mxu0 0.0
        %2151 = vmatprep.subr.mxu0 0.0
        %2152 = vmatpush1.msra.mxu0 0.0
        %2153 = vmatprep.subr.mxu0 0.0
        %2154 = vmatpush1.msra.mxu0 0.0
        %2155 = vmatprep.subr.mxu0 0.0
        %2156 = vmatpush1.msra.mxu0 0.0
        %2157 = vmatprep.subr.mxu0 0.0
        %2158 = vmatpush1.msra.mxu0 0.0
        %2159 = vmatprep.subr.mxu0 0.0
        %2160 = vmatpush1.msra.mxu0 %v2121
        %2161 = vmatprep.subr.mxu0 0.0
        %2162 = vmatpush1.msra.mxu0 %v2120
        %2163 = vmatprep.subr.mxu0 0.0
        %2164 = vmatpush1.msra.mxu0 %v2119
        %2165 = vmatprep.subr.mxu0 0.0
        %2166 = vmatpush1.msra.mxu0 %v2118
        %2167 = vmatprep.subr.mxu0 0.0
        %2168 = vmatpush2.msra.mxu0 0.0
        %2169 = vmatprep.subr.mxu0 0.0
        %2170 = vmatpush2.msra.mxu0 0.0
        %2171 = vmatprep.subr.mxu0 0.0
        %2172 = vmatpush2.msra.mxu0 0.0
        %2173 = vmatprep.subr.mxu0 0.0
        %2174 = vmatpush2.msra.mxu0 0.0
        %2175 = vmatprep.subr.mxu0 0.0
        %2176 = vmatpush2.msra.mxu0 0.0
        %2177 = vmatprep.subr.mxu0 0.0
        %2178 = vmatpush2.msra.mxu0 0.0
        %2179 = vmatprep.subr.mxu0 0.0
        %2180 = vmatpush2.msra.mxu0 0.0
        %2181 = vmatprep.subr.mxu0 0.0
        %2182 = vmatpush2.msra.mxu0 0.0
        %2183 = vmatprep.subr.mxu0 0.0
        %2184 = vmatpush2.msra.mxu0 0.0
        %2185 = vmatprep.subr.mxu0 0.0
        %2186 = vmatpush2.msra.mxu0 0.0
        %2187 = vmatprep.subr.mxu0 0.0
        %2188 = vmatpush2.msra.mxu0 0.0
        %2189 = vmatprep.subr.mxu0 0.0
        %2190 = vmatpush2.msra.mxu0 0.0
        %2191 = vmatprep.subr.mxu0 0.0
        %2192 = vmatpush2.msra.mxu0 0.0
        %2193 = vmatprep.subr.mxu0 0.0
        %2194 = vmatpush2.msra.mxu0 0.0
        %2195 = vmatprep.subr.mxu0 0.0
        %2196 = vmatpush2.msra.mxu0 0.0
        %2197 = vmatprep.subr.mxu0 0.0
        %2198 = vmatpush2.msra.mxu0 0.0
        %2199 = vmatprep.mubr.f32.mxu0 0.0
        %2200 = vmatmul.mubr.f32.gmra.mxu0 %v2130
        %v2201 = vpop.f32.mrf.mxu0
        %v2202 = vadd.f32 %v2127, %v2201
        %v2203 = vpop.f32.mrf.mxu0
        %2204 = vmatprep.mubr.f32.mxu0 0.0
        %2205 = vmatmul.mubr.f32.gmra.mxu0 %v2133
        %v2206 = vpop.f32.mrf.mxu0
        %v2207 = vadd.f32 %v2127, %v2206
        %v2208 = vpop.f32.mrf.mxu0
        %2209 = vdwg.mxu0
        %v2210 = vadd.f32 %v629, %v2202
        %v2211 = vadd.f32 %v630, %v2207
        %v2212 = vld [vmem:[%s599] sm:$0x1]
        %v2213 = vld [vmem:[%s602] sm:$0x1]
        %v2214 = vsel %vm633, %v2210, 0.0
        %2215 = vadd.xlane.f32.xlu0 %v2214
        %v2216 = vpop.xlane.xlu0 %2215
        %v2217 = vsel %vm633, %v2211, 0.0
        %2218 = vadd.xlane.f32.xlu0 %v2217
        %v2219 = vpop.xlane.xlu0 %2218
        %v2220 = vmul.f32 %v2216, %v640
        %v2221 = vmul.f32 %v2219, %v640
        %v2222 = vsub.f32 %v2210, %v2220
        %v2223 = vsub.f32 %v2211, %v2221
        %v2224 = vmul.f32 %v2222, %v2222
        %v2225 = vmul.f32 %v2223, %v2223
        %v2226 = vsel %vm633, %v2224, 0.0
        %2227 = vadd.xlane.f32.xlu0 %v2226
        %v2228 = vpop.xlane.xlu0 %2227
        %v2229 = vsel %vm633, %v2225, 0.0
        %2230 = vadd.xlane.f32.xlu0 %v2229
        %v2231 = vpop.xlane.xlu0 %2230
        %v2232 = vmul.f32 %v2228, %v640
        %v2233 = vmul.f32 %v2231, %v640
        %v2234 = vadd.f32 %v2232, 1e-05
        %v2235 = vadd.f32 %v2233, 1e-05
        %v2236 = vrsqrt.pop %v2234
        %v2237 = vrsqrt.pop %v2235
        %v2238 = vmul.f32 %v2222, %v2236
        %v2239 = vmul.f32 %v2223, %v2237
        %v2241 = vlaneseq
        %v2242 = vshrl.u32 %v2241, 7
        %v2243 = vsub.s32 0, %v2242
        %v2244 = vrot.slane %v2212, %v2243
        %v2246 = vmul.f32 %v2238, %v2244
        %v2247 = vmul.f32 %v2239, %v2244
        %v2249 = vlaneseq
        %v2250 = vshrl.u32 %v2249, 7
        %v2251 = vsub.s32 0, %v2250
        %v2252 = vrot.slane %v2213, %v2251
        %v2254 = vadd.f32 %v2246, %v2252
        %v2255 = vadd.f32 %v2247, %v2252
        %v2256 = vld [vmem:[%s607] sm:$0xff]
        %v2257 = vld [vmem:[%s607 + $0x8] sm:$0xff]
        %v2258 = vld [vmem:[%s607 + $0x10] sm:$0xff]
        %v2259 = vld [vmem:[%s607 + $0x18] sm:$0xff]
        %v2260 = vld [vmem:[%s610] sm:$0x1]
        %v2262 = vlaneseq
        %v2263 = vshrl.u32 %v2262, 7
        %v2264 = vsub.s32 0, %v2263
        %v2265 = vrot.slane %v2260, %v2264
        %v2268 = vsel %vm633, %v2254, 0
        %v2271 = vsel %vm633, %v2255, 0
        %2273 = vmatprep.subr.mxu0 0.0
        %2274 = vmatpush1.msra.mxu0 0.0
        %2275 = vmatprep.subr.mxu0 0.0
        %2276 = vmatpush1.msra.mxu0 0.0
        %2277 = vmatprep.subr.mxu0 0.0
        %2278 = vmatpush1.msra.mxu0 0.0
        %2279 = vmatprep.subr.mxu0 0.0
        %2280 = vmatpush1.msra.mxu0 0.0
        %2281 = vmatprep.subr.mxu0 0.0
        %2282 = vmatpush1.msra.mxu0 0.0
        %2283 = vmatprep.subr.mxu0 0.0
        %2284 = vmatpush1.msra.mxu0 0.0
        %2285 = vmatprep.subr.mxu0 0.0
        %2286 = vmatpush1.msra.mxu0 0.0
        %2287 = vmatprep.subr.mxu0 0.0
        %2288 = vmatpush1.msra.mxu0 0.0
        %2289 = vmatprep.subr.mxu0 0.0
        %2290 = vmatpush1.msra.mxu0 0.0
        %2291 = vmatprep.subr.mxu0 0.0
        %2292 = vmatpush1.msra.mxu0 0.0
        %2293 = vmatprep.subr.mxu0 0.0
        %2294 = vmatpush1.msra.mxu0 0.0
        %2295 = vmatprep.subr.mxu0 0.0
        %2296 = vmatpush1.msra.mxu0 0.0
        %2297 = vmatprep.subr.mxu0 0.0
        %2298 = vmatpush1.msra.mxu0 %v2259
        %2299 = vmatprep.subr.mxu0 0.0
        %2300 = vmatpush1.msra.mxu0 %v2258
        %2301 = vmatprep.subr.mxu0 0.0
        %2302 = vmatpush1.msra.mxu0 %v2257
        %2303 = vmatprep.subr.mxu0 0.0
        %2304 = vmatpush1.msra.mxu0 %v2256
        %2305 = vmatprep.subr.mxu0 0.0
        %2306 = vmatpush2.msra.mxu0 0.0
        %2307 = vmatprep.subr.mxu0 0.0
        %2308 = vmatpush2.msra.mxu0 0.0
        %2309 = vmatprep.subr.mxu0 0.0
        %2310 = vmatpush2.msra.mxu0 0.0
        %2311 = vmatprep.subr.mxu0 0.0
        %2312 = vmatpush2.msra.mxu0 0.0
        %2313 = vmatprep.subr.mxu0 0.0
        %2314 = vmatpush2.msra.mxu0 0.0
        %2315 = vmatprep.subr.mxu0 0.0
        %2316 = vmatpush2.msra.mxu0 0.0
        %2317 = vmatprep.subr.mxu0 0.0
        %2318 = vmatpush2.msra.mxu0 0.0
        %2319 = vmatprep.subr.mxu0 0.0
        %2320 = vmatpush2.msra.mxu0 0.0
        %2321 = vmatprep.subr.mxu0 0.0
        %2322 = vmatpush2.msra.mxu0 0.0
        %2323 = vmatprep.subr.mxu0 0.0
        %2324 = vmatpush2.msra.mxu0 0.0
        %2325 = vmatprep.subr.mxu0 0.0
        %2326 = vmatpush2.msra.mxu0 0.0
        %2327 = vmatprep.subr.mxu0 0.0
        %2328 = vmatpush2.msra.mxu0 0.0
        %2329 = vmatprep.subr.mxu0 0.0
        %2330 = vmatpush2.msra.mxu0 0.0
        %2331 = vmatprep.subr.mxu0 0.0
        %2332 = vmatpush2.msra.mxu0 0.0
        %2333 = vmatprep.subr.mxu0 0.0
        %2334 = vmatpush2.msra.mxu0 0.0
        %2335 = vmatprep.subr.mxu0 0.0
        %2336 = vmatpush2.msra.mxu0 0.0
        %2337 = vmatprep.mubr.f32.mxu0 0.0
        %2338 = vmatmul.mubr.f32.gmra.mxu0 %v2268
        %v2339 = vpop.f32.mrf.mxu0
        %v2340 = vadd.f32 %v2265, %v2339
        %v2341 = vpop.f32.mrf.mxu0
        %2342 = vmatprep.mubr.f32.mxu0 0.0
        %2343 = vmatmul.mubr.f32.gmra.mxu0 %v2271
        %v2344 = vpop.f32.mrf.mxu0
        %v2345 = vadd.f32 %v2265, %v2344
        %v2346 = vpop.f32.mrf.mxu0
        %2347 = vdwg.mxu0
        %v2348 = vmul.f32 %v2340, 0.5
        %v2349 = vmul.f32 %v2345, 0.5
        %v2350 = vmul.f32 %v2340, 0.70710677
        %v2351 = vmul.f32 %v2345, 0.70710677
        %vm2352 = vcmp.ge.f32.partialorder %v2350, 0.0
        %vm2353 = vcmp.ge.f32.partialorder %v2351, 0.0
        %v2354 = vsel %vm2352, 1.0, -1.0
        %v2355 = vsel %vm2353, 1.0, -1.0
        %v2356 = vand.u32 2147483647, %v2350
        %v2357 = vand.u32 2147483647, %v2351
        %v2358 = vmul.f32 %v2356, 0.3275911
        %v2359 = vmul.f32 %v2357, 0.3275911
        %v2360 = vadd.f32 %v2358, 1.0
        %v2361 = vadd.f32 %v2359, 1.0
        %v2362 = vrcp.pop %v2360
        %v2363 = vmul.f32 1.0, %v2362
        %v2364 = vrcp.pop %v2361
        %v2365 = vmul.f32 1.0, %v2364
        %v2366 = vmul.f32 %v2363, 1.0614054
        %v2367 = vmul.f32 %v2365, 1.0614054
        %v2368 = vadd.f32 %v2366, -1.4531521
        %v2369 = vadd.f32 %v2367, -1.4531521
        %v2370 = vmul.f32 %v2368, %v2363
        %v2371 = vmul.f32 %v2369, %v2365
        %v2372 = vadd.f32 %v2370, 1.4214138
        %v2373 = vadd.f32 %v2371, 1.4214138
        %v2374 = vmul.f32 %v2372, %v2363
        %v2375 = vmul.f32 %v2373, %v2365
        %v2376 = vadd.f32 %v2374, -0.28449672
        %v2377 = vadd.f32 %v2375, -0.28449672
        %v2378 = vmul.f32 %v2376, %v2363
        %v2379 = vmul.f32 %v2377, %v2365
        %v2380 = vadd.f32 %v2378, 0.2548296
        %v2381 = vadd.f32 %v2379, 0.2548296
        %v2382 = vmul.f32 %v2380, %v2363
        %v2383 = vmul.f32 %v2381, %v2365
        %v2384 = vsub.f32 0.0, %v2356
        %v2385 = vsub.f32 0.0, %v2357
        %v2386 = vmul.f32 %v2384, %v2356
        %v2387 = vmul.f32 %v2385, %v2357
        %v2388 = vmul.f32 %v2386, 1.442695
        %v2389 = vpow.pop %v2388
        %v2390 = vmul.f32 %v2387, 1.442695
        %v2391 = vpow.pop %v2390
        %v2392 = vmul.f32 %v2382, %v2389
        %v2393 = vmul.f32 %v2383, %v2391
        %v2394 = vsub.f32 1.0, %v2392
        %v2395 = vsub.f32 1.0, %v2393
        %v2396 = vmul.f32 %v2354, %v2394
        %v2397 = vmul.f32 %v2355, %v2395
        %v2398 = vadd.f32 %v2396, 1.0
        %v2399 = vadd.f32 %v2397, 1.0
        %v2400 = vmul.f32 %v2348, %v2398
        %v2401 = vmul.f32 %v2349, %v2399
        %v2402 = vld [vmem:[%s615] sm:$0xff]
        %v2403 = vld [vmem:[%s615 + $0x8] sm:$0xff]
        %v2404 = vld [vmem:[%s615 + $0x10] sm:$0xff]
        %v2405 = vld [vmem:[%s615 + $0x18] sm:$0xff]
        %v2406 = vld [vmem:[%s615 + $0x20] sm:$0xff]
        %v2407 = vld [vmem:[%s615 + $0x28] sm:$0xff]
        %v2408 = vld [vmem:[%s615 + $0x30] sm:$0xff]
        %v2409 = vld [vmem:[%s615 + $0x38] sm:$0xff]
        %v2410 = vld [vmem:[%s618] sm:$0x1]
        %v2412 = vlaneseq
        %v2413 = vshrl.u32 %v2412, 7
        %v2414 = vsub.s32 0, %v2413
        %v2415 = vrot.slane %v2410, %v2414
        %vm2417 = vcmask 523264
        %v2419 = vsel %vm2417, %v2400, 0
        %v2422 = vsel %vm2417, %v2401, 0
        %2424 = vmatprep.subr.mxu0 0.0
        %2425 = vmatpush1.msra.mxu0 0.0
        %2426 = vmatprep.subr.mxu0 0.0
        %2427 = vmatpush1.msra.mxu0 0.0
        %2428 = vmatprep.subr.mxu0 0.0
        %2429 = vmatpush1.msra.mxu0 0.0
        %2430 = vmatprep.subr.mxu0 0.0
        %2431 = vmatpush1.msra.mxu0 0.0
        %2432 = vmatprep.subr.mxu0 0.0
        %2433 = vmatpush1.msra.mxu0 0.0
        %2434 = vmatprep.subr.mxu0 0.0
        %2435 = vmatpush1.msra.mxu0 0.0
        %2436 = vmatprep.subr.mxu0 0.0
        %2437 = vmatpush1.msra.mxu0 0.0
        %2438 = vmatprep.subr.mxu0 0.0
        %2439 = vmatpush1.msra.mxu0 0.0
        %2440 = vmatprep.subr.mxu0 0.0
        %2441 = vmatpush1.msra.mxu0 %v2409
        %2442 = vmatprep.subr.mxu0 0.0
        %2443 = vmatpush1.msra.mxu0 %v2408
        %2444 = vmatprep.subr.mxu0 0.0
        %2445 = vmatpush1.msra.mxu0 %v2407
        %2446 = vmatprep.subr.mxu0 0.0
        %2447 = vmatpush1.msra.mxu0 %v2406
        %2448 = vmatprep.subr.mxu0 0.0
        %2449 = vmatpush1.msra.mxu0 %v2405
        %2450 = vmatprep.subr.mxu0 0.0
        %2451 = vmatpush1.msra.mxu0 %v2404
        %2452 = vmatprep.subr.mxu0 0.0
        %2453 = vmatpush1.msra.mxu0 %v2403
        %2454 = vmatprep.subr.mxu0 0.0
        %2455 = vmatpush1.msra.mxu0 %v2402
        %2456 = vmatprep.subr.mxu0 0.0
        %2457 = vmatpush2.msra.mxu0 0.0
        %2458 = vmatprep.subr.mxu0 0.0
        %2459 = vmatpush2.msra.mxu0 0.0
        %2460 = vmatprep.subr.mxu0 0.0
        %2461 = vmatpush2.msra.mxu0 0.0
        %2462 = vmatprep.subr.mxu0 0.0
        %2463 = vmatpush2.msra.mxu0 0.0
        %2464 = vmatprep.subr.mxu0 0.0
        %2465 = vmatpush2.msra.mxu0 0.0
        %2466 = vmatprep.subr.mxu0 0.0
        %2467 = vmatpush2.msra.mxu0 0.0
        %2468 = vmatprep.subr.mxu0 0.0
        %2469 = vmatpush2.msra.mxu0 0.0
        %2470 = vmatprep.subr.mxu0 0.0
        %2471 = vmatpush2.msra.mxu0 0.0
        %2472 = vmatprep.subr.mxu0 0.0
        %2473 = vmatpush2.msra.mxu0 0.0
        %2474 = vmatprep.subr.mxu0 0.0
        %2475 = vmatpush2.msra.mxu0 0.0
        %2476 = vmatprep.subr.mxu0 0.0
        %2477 = vmatpush2.msra.mxu0 0.0
        %2478 = vmatprep.subr.mxu0 0.0
        %2479 = vmatpush2.msra.mxu0 0.0
        %2480 = vmatprep.subr.mxu0 0.0
        %2481 = vmatpush2.msra.mxu0 0.0
        %2482 = vmatprep.subr.mxu0 0.0
        %2483 = vmatpush2.msra.mxu0 0.0
        %2484 = vmatprep.subr.mxu0 0.0
        %2485 = vmatpush2.msra.mxu0 0.0
        %2486 = vmatprep.subr.mxu0 0.0
        %2487 = vmatpush2.msra.mxu0 0.0
        %2488 = vmatprep.mubr.f32.mxu0 0.0
        %2489 = vmatmul.mubr.f32.gmra.mxu0 %v2419
        %v2490 = vpop.f32.mrf.mxu0
        %v2491 = vadd.f32 %v2415, %v2490
        %v2492 = vpop.f32.mrf.mxu0
        %2493 = vmatprep.mubr.f32.mxu0 0.0
        %2494 = vmatmul.mubr.f32.gmra.mxu0 %v2422
        %v2495 = vpop.f32.mrf.mxu0
        %v2496 = vadd.f32 %v2415, %v2495
        %v2497 = vpop.f32.mrf.mxu0
        %2498 = vdwg.mxu0
        %v2499 = vadd.f32 %v2210, %v2491
        %v2500 = vadd.f32 %v2211, %v2496
        %2501 = vst.msk [vmem:[#allocation8] sm:$0xff] %vm633, %v2499
        %2502 = vst.msk [vmem:[#allocation8 + $0x8] sm:$0xff] %vm633, %v2500
        // Predicated region
        $region81: #{tpu_custom_call.1} parent=67 // pred_check
          %p2503 = pneg %p370
        $region82: #{tpu_custom_call.1} parent=67 // pred_check_branch
          %2505 = sbr.rel (%p2503) target = $region84
        $region83: #{tpu_custom_call.1} parent=67 // pred_region
          %s2506 = smul.u32 2, %s32
          %s2508 = ssub.s32 256, 256
          %2509 = vsyncadd [#allocation5], %s2508
          %s2510 = smul.addr %s2506, 128
          %s2511 = scalar_lea.hbm %s12, %s2510
          %s2512 = sshll.u32 [#allocation8], 4
          %s2513 = int_to_ptr.vmem [resolvable:$true] %s2512
          %2518 = dma.vmem_to_hbm [thread:$0]  %s2513, 256, %s2511, [#allocation5], 128, 128, 8
        $region84: #{tpu_custom_call.1} parent=67 // pred_fallthru
          _
        // Predicated region
        $region85: #{tpu_custom_call.1} parent=67 // pred_check
          %p2519 = pneg %p370
        $region86: #{tpu_custom_call.1} parent=67 // pred_check_branch
          %2521 = sbr.rel (%p2519) target = $region88
        $region87: #{tpu_custom_call.1} parent=67 // pred_region
          %2522 = dma.done [#allocation5], 256
        $region88: #{tpu_custom_call.1} parent=67 // pred_fallthru
          _
      $region68: #{tpu_custom_call.1} parent=5 // pred_fallthru
        _
      %p2523 = scmp.le.s32.totalorder 2, %s23
      // Predicated region
      $region89: #{tpu_custom_call.1} parent=5 // pred_check
        %p2524 = pneg %p2523
      $region90: #{tpu_custom_call.1} parent=5 // pred_check_branch
        %2526 = sbr.rel (%p2524) target = $region92
      $region91: #{tpu_custom_call.1} parent=5 // pred_region
        %s2527 = ssub.s32 %s23, 2
      $region92: #{tpu_custom_call.1} parent=5 // pred_fallthru
        _
    $region6: #{tpu_custom_call.1} parent=1 // loop_footer
      %s27 = sadd.s32 1, %s23
    $region7: #{tpu_custom_call.1} parent=1 // loop_footer_branch
      %22 = sbr.rel target = $region3
    $region8: #{tpu_custom_call.1} parent=1 // loop_exit
      _
    %2528 = vsyncpa [#allocation4], 1
    %s2529 = scalar_lea.sflag [#allocation4], 1
    %2530 = vsyncpa %s2529, 1
    %2531 = vsyncpa [#allocation7], 1
    %s2532 = scalar_lea.sflag [#allocation7], 1
    %2533 = vsyncpa %s2532, 1
    %2534 = vsyncpa [#allocation5], 1
    %s2535 = scalar_lea.sflag [#allocation5], 1
    %2536 = vsyncpa %s2535, 1

</llo_original>
